<compile_context>
chip_gen: v7x
topology: tpu7x:2x2x1
jax: 0.10.0
libtpu: 0.0.40
codegen_flags: <defaults>
</compile_context>

<pallas_src>
import jax
import jax.numpy as jnp
from jax import lax
from jax.experimental import pallas as pl
from jax.experimental.pallas import tpu as pltpu

NUM_LAYERS = 2  # cfg.network.policy.rnn.rnn_num_layers (kernel hardcodes the 2-layer wavefront)


def _make_rnn_actor_kernel(T, Bc, H):
    """Builds the per-batch-chunk kernel for static (T, Bc, H)."""

    def kernel(obs_ref,
               w_e1_ref, b_e1_ref, w_e2_ref, b_e2_ref,
               w_ih1_ref, w_hh1_ref, b1_ref,
               w2_ref, b2_ref,
               w_d1_ref, b_d1_ref, w_d2_ref, b_d2_ref,
               out_ref):
        f32 = jnp.float32
        bf16 = jnp.bfloat16

        # --- ObservationEncoder, batched over all T*Bc rows (time-independent) ---
        x = obs_ref[...].astype(bf16)                               # (T*Bc, obs_dim)
        e1 = jnp.maximum(
            jnp.dot(x, w_e1_ref[...], preferred_element_type=f32) + b_e1_ref[...],
            0.0)
        lat = (jnp.dot(e1.astype(bf16), w_e2_ref[...], preferred_element_type=f32)
               + b_e2_ref[...])                                     # (T*Bc, D) f32

        # Hoisted gate-lane constants (PyTorch gate order [i, f, g, o]):
        # g-gate lanes (2H..3H) use tanh, the rest sigmoid. sigmoid(x)=0.5*(1+tanh(x/2))
        # => one EUP tanh pass per step over the whole (Bc,4H)=(8,128) vreg.
        lane = lax.broadcasted_iota(jnp.int32, (Bc, 4 * H), 1)
        g_lanes = (lane >= 2 * H) & (lane < 3 * H)
        pre_scale = jnp.where(g_lanes, 1.0, 0.5).astype(f32)

        def gate_step(gates, c):
            y = jnp.tanh(gates * pre_scale)                         # single EUP pass
            act = jnp.where(g_lanes, y, 0.5 * (y + 1.0))            # cheap VPU select
            i_g = act[:, 0 * H:1 * H]
            f_g = act[:, 1 * H:2 * H]
            g_g = act[:, 2 * H:3 * H]
            o_g = act[:, 3 * H:4 * H]
            c_new = f_g * c + i_g * g_g
            h_new = o_g * jnp.tanh(c_new)
            return h_new, c_new

        # Hoisted layer-1 input->gates projection for ALL timesteps (+ folded bias).
        gates_x1 = (jnp.dot(lat.astype(bf16), w_ih1_ref[...],
                            preferred_element_type=f32)
                    + b1_ref[...])                                  # (T*Bc, 4H) f32
        w_hh1 = w_hh1_ref[...]                                      # (H, 4H)  bf16
        w2 = w2_ref[...]                                            # (2H, 4H) bf16 = [W_ih2; W_hh2]
        b2 = b2_ref[...]                                            # (1, 4H)  f32

        zeros = jnp.zeros((Bc, H), f32)                             # zero init state
        h1, c1 = zeros, zeros
        h2, c2 = zeros, zeros
        h2_seq = []

        # 1-step-skew wavefront over the two stacked LSTM layers. At wavefront s,
        # layer-1 computes step s (needs h1_{s-1}) while layer-2 computes step s-1
        # (needs h1_{s-1}, h2_{s-2}); the two chains are independent within the body.
        # TODO(synk): for large rnn_horizon (T >> 8) switch the static unroll to
        # lax.fori_loop(unroll=4..8) with pl.ds indexing to bound vreg pressure.
        for s in range(T + 1):                                      # static unroll (small T)
            h1_new, c1_new = None, None
            if s < T:
                g1 = (gates_x1[s * Bc:(s + 1) * Bc, :]
                      + jnp.dot(h1.astype(bf16), w_hh1,
                                preferred_element_type=f32))        # (Bc, 4H)
                h1_new, c1_new = gate_step(g1, c1)
            if s >= 1:
                # layer-2 step s-1: fused input+recurrent projection, one MXU pass.
                inp2 = jnp.concatenate(
                    [h1.astype(bf16), h2.astype(bf16)], axis=1)      # (Bc, 2H)
                g2 = jnp.dot(inp2, w2, preferred_element_type=f32) + b2
                h2, c2 = gate_step(g2, c2)
                h2_seq.append(h2)
            if s < T:
                h1, c1 = h1_new, c1_new

        lstm_out = jnp.concatenate(h2_seq, axis=0)                  # (T*Bc, H), time-major

        # --- per-step MLP decoder, batched over all T*Bc rows (time-independent) ---
        d1 = jnp.maximum(
            jnp.dot(lstm_out.astype(bf16), w_d1_ref[...],
                    preferred_element_type=f32) + b_d1_ref[...], 0.0)
        out = (jnp.dot(d1.astype(bf16), w_d2_ref[...], preferred_element_type=f32)
               + b_d2_ref[...])                                     # (T*Bc, A_pad)
        out_ref[...] = out.astype(out_ref.dtype)                    # one lane-dense store

    return kernel


def rnn_actor_forward(obs_btd, params, batch_chunk=8):
    """obs_btd: (B, T, obs_dim) -> predictions (B, T, action_dim)."""
    B, T, obs_dim = obs_btd.shape
    bc = min(batch_chunk, B)
    # TODO(synk): batches not a multiple of 8 need wrapper-side padding (sublane tiling).
    assert B % bc == 0 and bc % 8 == 0, "batch chunk must divide B and be a multiple of 8"
    G = B // bc

    enc_hidden = params["w_e1"].shape[1]
    D = params["w_e2"].shape[1]
    H = params["w_hh1"].shape[0]
    mlp_hidden = params["w_d1"].shape[1]
    A = params["w_d2"].shape[1]

    # pad decoder output layer to a lane-dense width (multiple of 128 lanes)
    A_pad = max(128, ((A + 127) // 128) * 128)

    bf16 = jnp.bfloat16
    # bf16 matmul inputs, f32 accumulation inside the kernel
    w_e1 = params["w_e1"].astype(bf16)
    w_e2 = params["w_e2"].astype(bf16)
    w_ih1 = params["w_ih1"].astype(bf16)
    w_hh1 = params["w_hh1"].astype(bf16)
    w2_cat = jnp.concatenate([params["w_ih2"], params["w_hh2"]], axis=0).astype(bf16)  # (2H,4H)
    w_d1 = params["w_d1"].astype(bf16)
    w_d2p = jnp.pad(params["w_d2"], ((0, 0), (0, A_pad - A))).astype(bf16)
    b_d2p = jnp.pad(params["b_d2"], ((0, 0), (0, A_pad - A)))

    # group batch into independent chunks, time-major within each chunk:
    # row index inside a chunk = t * bc + b'
    obs_g = (obs_btd.reshape(G, bc, T, obs_dim)
             .transpose(0, 2, 1, 3)
             .reshape(G, T * bc, obs_dim))

    def rep_spec(shape):
        n = len(shape)
        return pl.BlockSpec(shape, lambda g, _n=n: (0,) * _n)      # resident across grid

    out_g = pl.pallas_call(
        _make_rnn_actor_kernel(T, bc, H),
        out_shape=jax.ShapeDtypeStruct((G, T * bc, A_pad), jnp.float32),
        grid=(G,),
        in_specs=[
            pl.BlockSpec((pl.Squeezed(), T * bc, obs_dim), lambda g: (g, 0, 0)),  # obs chunk
            rep_spec((obs_dim, enc_hidden)), rep_spec((1, enc_hidden)),           # enc l1
            rep_spec((enc_hidden, D)), rep_spec((1, D)),                          # enc l2
            rep_spec((D, 4 * H)), rep_spec((H, 4 * H)), rep_spec((1, 4 * H)),     # LSTM layer 1
            rep_spec((2 * H, 4 * H)), rep_spec((1, 4 * H)),                       # LSTM layer 2 (fused)
            rep_spec((H, mlp_hidden)), rep_spec((1, mlp_hidden)),                 # dec l1
            rep_spec((mlp_hidden, A_pad)), rep_spec((1, A_pad)),                  # dec l2
        ],
        out_specs=pl.BlockSpec((pl.Squeezed(), T * bc, A_pad), lambda g: (g, 0, 0)),
        compiler_params=pltpu.CompilerParams(
            # batch chunks are independent sequences -> megacore-shardable on v7x
            dimension_semantics=("parallel",),
            vmem_limit_bytes=32 * 1024 * 1024),
    )(obs_g,
      w_e1, params["b_e1"], w_e2, params["b_e2"],
      w_ih1, w_hh1, params["b_1"],
      w2_cat, params["b_2"],
      w_d1, params["b_d1"], w_d2p, b_d2p)

    out = (out_g.reshape(G, T, bc, A_pad)
           .transpose(0, 2, 1, 3)
           .reshape(B, T, A_pad))
    return out[:, :, :A]                                            # back to (B, T, A)


def rnn_actor_reference(obs_btd, p):
    """Pure-JAX f32 reference (same math, lax.scan recurrence, true sigmoid/tanh)."""
    e1 = jnp.maximum(obs_btd @ p["w_e1"] + p["b_e1"], 0.0)
    lat = e1 @ p["w_e2"] + p["b_e2"]                                # (B, T, D)
    B, T, _ = lat.shape
    H = p["w_hh1"].shape[0]
    w_ih = (p["w_ih1"], p["w_ih2"])
    w_hh = (p["w_hh1"], p["w_hh2"])
    b_l = (p["b_1"], p["b_2"])

    def step(carry, x_t):
        hs, cs = carry
        inp = x_t
        new_hs, new_cs = [], []
        for l in range(NUM_LAYERS):
            gates = inp @ w_ih[l] + hs[l] @ w_hh[l] + b_l[l]
            i_g = jax.nn.sigmoid(gates[:, 0 * H:1 * H])
            f_g = jax.nn.sigmoid(gates[:, 1 * H:2 * H])
            g_g = jnp.tanh(gates[:, 2 * H:3 * H])
            o_g = jax.nn.sigmoid(gates[:, 3 * H:4 * H])
            c_new = f_g * cs[l] + i_g * g_g
            h_new = o_g * jnp.tanh(c_new)
            new_hs.append(h_new)
            new_cs.append(c_new)
            inp = h_new
        return (tuple(new_hs), tuple(new_cs)), inp

    init = (tuple(jnp.zeros((B, H), jnp.float32) for _ in range(NUM_LAYERS)),
            tuple(jnp.zeros((B, H), jnp.float32) for _ in range(NUM_LAYERS)))
    _, outs = lax.scan(step, init, jnp.transpose(lat, (1, 0, 2)))
    outs = jnp.transpose(outs, (1, 0, 2))                           # (B, T, H)
    d1 = jnp.maximum(outs @ p["w_d1"] + p["b_d1"], 0.0)
    return d1 @ p["w_d2"] + p["b_d2"]


def make_params(key, obs_dim, enc_hidden, D, H, mlp_hidden, A):
    ks = jax.random.split(key, 16)
    n = lambda k, shape: (0.1 * jax.random.normal(k, shape)).astype(jnp.float32)
    return {
        "w_e1": n(ks[0], (obs_dim, enc_hidden)), "b_e1": n(ks[1], (1, enc_hidden)),
        "w_e2": n(ks[2], (enc_hidden, D)),       "b_e2": n(ks[3], (1, D)),
        # LSTM layer 1 (input D) and layer 2 (input H); b = b_ih + b_hh folded
        "w_ih1": n(ks[4], (D, 4 * H)), "w_hh1": n(ks[5], (H, 4 * H)), "b_1": n(ks[6], (1, 4 * H)),
        "w_ih2": n(ks[7], (H, 4 * H)), "w_hh2": n(ks[8], (H, 4 * H)), "b_2": n(ks[9], (1, 4 * H)),
        "w_d1": n(ks[10], (H, mlp_hidden)),      "b_d1": n(ks[11], (1, mlp_hidden)),
        "w_d2": n(ks[12], (mlp_hidden, A)),      "b_d2": n(ks[13], (1, A)),
    }


if __name__ == "__main__":
    # small, module-consistent shapes
    B, T = 8, 8                 # batch, rnn_horizon
    obs_dim = 16                # raw low-dim observation size
    enc_hidden = 32             # obs_encoder hidden
    D = 32                      # rnn_input_dim (sum of encoder output dims)
    H = 32                      # rnn_hidden_dim
    mlp_hidden = 32             # mlp_decoder layer_dims
    A = 8                       # action_dim (gmm disabled -> output dim == A)

    key = jax.random.PRNGKey(0)
    k_obs, k_par = jax.random.split(key)
    obs = jax.random.normal(k_obs, (B, T, obs_dim), dtype=jnp.float32)
    params = make_params(k_par, obs_dim, enc_hidden, D, H, mlp_hidden, A)

    preds = rnn_actor_forward(obs, params)
    preds = jax.block_until_ready(preds)

    ref = jax.block_until_ready(rnn_actor_reference(obs, params))
    assert preds.shape == (B, T, A)
    # bf16 matmul inputs with f32 accumulation -> loosened tolerance vs f32 reference
    assert jnp.allclose(preds, ref, atol=2e-2, rtol=2e-2), "mismatch vs JAX reference"

    # TODO(synk): GMM head / MixtureSameFamily sampling and MSE loss branch are
    # post-processing glue in the original module, not part of the Pallas hot path.
    print("KERNEL_OK")
</pallas_src>

<mosaic_0001>
module attributes {stable_mosaic.version = 11 : i64} {
  func.func @kernel(%arg0: i32, %arg1: memref<1x64x16xf32, #tpu.memory_space<vmem>>, %arg2: memref<16x32xbf16, #tpu.memory_space<vmem>>, %arg3: memref<1x32xf32, #tpu.memory_space<vmem>>, %arg4: memref<32x32xbf16, #tpu.memory_space<vmem>>, %arg5: memref<1x32xf32, #tpu.memory_space<vmem>>, %arg6: memref<32x128xbf16, #tpu.memory_space<vmem>>, %arg7: memref<32x128xbf16, #tpu.memory_space<vmem>>, %arg8: memref<1x128xf32, #tpu.memory_space<vmem>>, %arg9: memref<64x128xbf16, #tpu.memory_space<vmem>>, %arg10: memref<1x128xf32, #tpu.memory_space<vmem>>, %arg11: memref<32x32xbf16, #tpu.memory_space<vmem>>, %arg12: memref<1x32xf32, #tpu.memory_space<vmem>>, %arg13: memref<32x128xbf16, #tpu.memory_space<vmem>>, %arg14: memref<1x128xf32, #tpu.memory_space<vmem>>, %arg15: memref<1x64x128xf32, #tpu.memory_space<vmem>>) attributes {dimension_semantics = [#tpu.dimension_semantics<parallel>], iteration_bounds = array<i64: 1>, scalar_prefetch = 0 : i64, scratch_operands = 0 : i64, tpu.core_type = #tpu.core_type<tc>, window_params = [{transform_indices = @transform_0, window_bounds = array<i64: 1, 64, 16>}, {pipeline_mode = #tpu.pipeline_mode<synchronous>, transform_indices = @transform_1, window_bounds = array<i64: 16, 32>}, {pipeline_mode = #tpu.pipeline_mode<synchronous>, transform_indices = @transform_2, window_bounds = array<i64: 1, 32>}, {pipeline_mode = #tpu.pipeline_mode<synchronous>, transform_indices = @transform_3, window_bounds = array<i64: 32, 32>}, {pipeline_mode = #tpu.pipeline_mode<synchronous>, transform_indices = @transform_4, window_bounds = array<i64: 1, 32>}, {pipeline_mode = #tpu.pipeline_mode<synchronous>, transform_indices = @transform_5, window_bounds = array<i64: 32, 128>}, {pipeline_mode = #tpu.pipeline_mode<synchronous>, transform_indices = @transform_6, window_bounds = array<i64: 32, 128>}, {pipeline_mode = #tpu.pipeline_mode<synchronous>, transform_indices = @transform_7, window_bounds = array<i64: 1, 128>}, {pipeline_mode = #tpu.pipeline_mode<synchronous>, transform_indices = @transform_8, window_bounds = array<i64: 64, 128>}, {pipeline_mode = #tpu.pipeline_mode<synchronous>, transform_indices = @transform_9, window_bounds = array<i64: 1, 128>}, {pipeline_mode = #tpu.pipeline_mode<synchronous>, transform_indices = @transform_10, window_bounds = array<i64: 32, 32>}, {pipeline_mode = #tpu.pipeline_mode<synchronous>, transform_indices = @transform_11, window_bounds = array<i64: 1, 32>}, {pipeline_mode = #tpu.pipeline_mode<synchronous>, transform_indices = @transform_12, window_bounds = array<i64: 32, 128>}, {pipeline_mode = #tpu.pipeline_mode<synchronous>, transform_indices = @transform_13, window_bounds = array<i64: 1, 128>}, {transform_indices = @transform_14, window_bounds = array<i64: 1, 64, 128>}]} {
    %c0 = arith.constant 0 : index
    %c0_0 = arith.constant 0 : index
    %c0_1 = arith.constant 0 : index
    %0 = vector.load %arg1[%c0, %c0_0, %c0_1] : memref<1x64x16xf32, #tpu.memory_space<vmem>>, vector<1x64x16xf32>
    %1 = vector.shape_cast %0 : vector<1x64x16xf32> to vector<64x16xf32>
    %2 = arith.truncf %1 : vector<64x16xf32> to vector<64x16xbf16>
    %c0_2 = arith.constant 0 : index
    %c0_3 = arith.constant 0 : index
    %3 = vector.load %arg2[%c0_2, %c0_3] : memref<16x32xbf16, #tpu.memory_space<vmem>>, vector<16x32xbf16>
    %cst = arith.constant dense<0.000000e+00> : vector<64x32xf32>
    %4 = tpu.matmul %2, %3, %cst {dimension_numbers = #tpu.dot_dimension_numbers<[1], [0], [0], [1], [0, 0, 1, 1], [], []>} : vector<64x16xbf16>, vector<16x32xbf16>, vector<64x32xf32> -> vector<64x32xf32>
    %c0_4 = arith.constant 0 : index
    %c0_5 = arith.constant 0 : index
    %5 = vector.load %arg3[%c0_4, %c0_5] : memref<1x32xf32, #tpu.memory_space<vmem>>, vector<1x32xf32>
    %6 = vector.broadcast %5 : vector<1x32xf32> to vector<64x32xf32>
    %7 = arith.addf %4, %6 : vector<64x32xf32>
    %cst_6 = arith.constant 0.000000e+00 : f32
    %8 = vector.broadcast %cst_6 : f32 to vector<64x32xf32>
    %9 = arith.maximumf %7, %8 : vector<64x32xf32>
    %10 = arith.truncf %9 : vector<64x32xf32> to vector<64x32xbf16>
    %c0_7 = arith.constant 0 : index
    %c0_8 = arith.constant 0 : index
    %11 = vector.load %arg4[%c0_7, %c0_8] : memref<32x32xbf16, #tpu.memory_space<vmem>>, vector<32x32xbf16>
    %cst_9 = arith.constant dense<0.000000e+00> : vector<64x32xf32>
    %12 = tpu.matmul %10, %11, %cst_9 {dimension_numbers = #tpu.dot_dimension_numbers<[1], [0], [0], [1], [0, 0, 1, 1], [], []>} : vector<64x32xbf16>, vector<32x32xbf16>, vector<64x32xf32> -> vector<64x32xf32>
    %c0_10 = arith.constant 0 : index
    %c0_11 = arith.constant 0 : index
    %13 = vector.load %arg5[%c0_10, %c0_11] : memref<1x32xf32, #tpu.memory_space<vmem>>, vector<1x32xf32>
    %14 = vector.broadcast %13 : vector<1x32xf32> to vector<64x32xf32>
    %15 = arith.addf %12, %14 : vector<64x32xf32>
    %16 = tpu.iota {dimensions = array<i32: 1>} : vector<8x128xi32>
    %c64_i32 = arith.constant 64 : i32
    %17 = vector.broadcast %c64_i32 : i32 to vector<8x128xi32>
    %18 = arith.cmpi sge, %16, %17 : vector<8x128xi32>
    %c96_i32 = arith.constant 96 : i32
    %19 = vector.broadcast %c96_i32 : i32 to vector<8x128xi32>
    %20 = arith.cmpi slt, %16, %19 : vector<8x128xi32>
    %21 = arith.andi %18, %20 : vector<8x128xi1>
    %cst_12 = arith.constant 1.000000e+00 : f32
    %cst_13 = arith.constant 5.000000e-01 : f32
    %22 = vector.broadcast %cst_12 : f32 to vector<8x128xf32>
    %23 = vector.broadcast %cst_13 : f32 to vector<8x128xf32>
    %24 = arith.select %21, %22, %23 : vector<8x128xi1>, vector<8x128xf32>
    %25 = arith.truncf %15 : vector<64x32xf32> to vector<64x32xbf16>
    %c0_14 = arith.constant 0 : index
    %c0_15 = arith.constant 0 : index
    %26 = vector.load %arg6[%c0_14, %c0_15] : memref<32x128xbf16, #tpu.memory_space<vmem>>, vector<32x128xbf16>
    %cst_16 = arith.constant dense<0.000000e+00> : vector<64x128xf32>
    %27 = tpu.matmul %25, %26, %cst_16 {dimension_numbers = #tpu.dot_dimension_numbers<[1], [0], [0], [1], [0, 0, 1, 1], [], []>} : vector<64x32xbf16>, vector<32x128xbf16>, vector<64x128xf32> -> vector<64x128xf32>
    %c0_17 = arith.constant 0 : index
    %c0_18 = arith.constant 0 : index
    %28 = vector.load %arg8[%c0_17, %c0_18] : memref<1x128xf32, #tpu.memory_space<vmem>>, vector<1x128xf32>
    %29 = vector.broadcast %28 : vector<1x128xf32> to vector<64x128xf32>
    %30 = arith.addf %27, %29 : vector<64x128xf32>
    %c0_19 = arith.constant 0 : index
    %c0_20 = arith.constant 0 : index
    %31 = vector.load %arg7[%c0_19, %c0_20] : memref<32x128xbf16, #tpu.memory_space<vmem>>, vector<32x128xbf16>
    %c0_21 = arith.constant 0 : index
    %c0_22 = arith.constant 0 : index
    %32 = vector.load %arg9[%c0_21, %c0_22] : memref<64x128xbf16, #tpu.memory_space<vmem>>, vector<64x128xbf16>
    %c0_23 = arith.constant 0 : index
    %c0_24 = arith.constant 0 : index
    %33 = vector.load %arg10[%c0_23, %c0_24] : memref<1x128xf32, #tpu.memory_space<vmem>>, vector<1x128xf32>
    %cst_25 = arith.constant 0.000000e+00 : f32
    %34 = vector.broadcast %cst_25 : f32 to vector<8x32xf32>
    %35 = vector.extract_strided_slice %30 {offsets = [0, 0], sizes = [8, 128], strides = [1, 1]} : vector<64x128xf32> to vector<8x128xf32>
    %36 = arith.truncf %34 : vector<8x32xf32> to vector<8x32xbf16>
    %cst_26 = arith.constant dense<0.000000e+00> : vector<8x128xf32>
    %37 = tpu.matmul %36, %31, %cst_26 {dimension_numbers = #tpu.dot_dimension_numbers<[1], [0], [0], [1], [0, 0, 1, 1], [], []>} : vector<8x32xbf16>, vector<32x128xbf16>, vector<8x128xf32> -> vector<8x128xf32>
    %38 = arith.addf %35, %37 : vector<8x128xf32>
    %39 = arith.mulf %38, %24 : vector<8x128xf32>
    %40 = math.tanh %39 : vector<8x128xf32>
    %cst_27 = arith.constant 1.000000e+00 : f32
    %41 = vector.broadcast %cst_27 : f32 to vector<8x128xf32>
    %42 = arith.addf %40, %41 : vector<8x128xf32>
    %cst_28 = arith.constant 5.000000e-01 : f32
    %43 = vector.broadcast %cst_28 : f32 to vector<8x128xf32>
    %44 = arith.mulf %43, %42 : vector<8x128xf32>
    %45 = arith.select %21, %40, %44 : vector<8x128xi1>, vector<8x128xf32>
    %46 = vector.extract_strided_slice %45 {offsets = [0, 0], sizes = [8, 32], strides = [1, 1]} : vector<8x128xf32> to vector<8x32xf32>
    %47 = vector.extract_strided_slice %45 {offsets = [0, 32], sizes = [8, 32], strides = [1, 1]} : vector<8x128xf32> to vector<8x32xf32>
    %48 = vector.extract_strided_slice %45 {offsets = [0, 64], sizes = [8, 32], strides = [1, 1]} : vector<8x128xf32> to vector<8x32xf32>
    %49 = vector.extract_strided_slice %45 {offsets = [0, 96], sizes = [8, 32], strides = [1, 1]} : vector<8x128xf32> to vector<8x32xf32>
    %50 = arith.mulf %47, %34 : vector<8x32xf32>
    %51 = arith.mulf %46, %48 : vector<8x32xf32>
    %52 = arith.addf %50, %51 : vector<8x32xf32>
    %53 = math.tanh %52 : vector<8x32xf32>
    %54 = arith.mulf %49, %53 : vector<8x32xf32>
    %55 = vector.extract_strided_slice %30 {offsets = [8, 0], sizes = [8, 128], strides = [1, 1]} : vector<64x128xf32> to vector<8x128xf32>
    %56 = arith.truncf %54 : vector<8x32xf32> to vector<8x32xbf16>
    %cst_29 = arith.constant dense<0.000000e+00> : vector<8x128xf32>
    %57 = tpu.matmul %56, %31, %cst_29 {dimension_numbers = #tpu.dot_dimension_numbers<[1], [0], [0], [1], [0, 0, 1, 1], [], []>} : vector<8x32xbf16>, vector<32x128xbf16>, vector<8x128xf32> -> vector<8x128xf32>
    %58 = arith.addf %55, %57 : vector<8x128xf32>
    %59 = arith.mulf %58, %24 : vector<8x128xf32>
    %60 = math.tanh %59 : vector<8x128xf32>
    %cst_30 = arith.constant 1.000000e+00 : f32
    %61 = vector.broadcast %cst_30 : f32 to vector<8x128xf32>
    %62 = arith.addf %60, %61 : vector<8x128xf32>
    %cst_31 = arith.constant 5.000000e-01 : f32
    %63 = vector.broadcast %cst_31 : f32 to vector<8x128xf32>
    %64 = arith.mulf %63, %62 : vector<8x128xf32>
    %65 = arith.select %21, %60, %64 : vector<8x128xi1>, vector<8x128xf32>
    %66 = vector.extract_strided_slice %65 {offsets = [0, 0], sizes = [8, 32], strides = [1, 1]} : vector<8x128xf32> to vector<8x32xf32>
    %67 = vector.extract_strided_slice %65 {offsets = [0, 32], sizes = [8, 32], strides = [1, 1]} : vector<8x128xf32> to vector<8x32xf32>
    %68 = vector.extract_strided_slice %65 {offsets = [0, 64], sizes = [8, 32], strides = [1, 1]} : vector<8x128xf32> to vector<8x32xf32>
    %69 = vector.extract_strided_slice %65 {offsets = [0, 96], sizes = [8, 32], strides = [1, 1]} : vector<8x128xf32> to vector<8x32xf32>
    %70 = arith.mulf %67, %52 : vector<8x32xf32>
    %71 = arith.mulf %66, %68 : vector<8x32xf32>
    %72 = arith.addf %70, %71 : vector<8x32xf32>
    %73 = math.tanh %72 : vector<8x32xf32>
    %74 = arith.mulf %69, %73 : vector<8x32xf32>
    %75 = arith.truncf %54 : vector<8x32xf32> to vector<8x32xbf16>
    %76 = arith.truncf %34 : vector<8x32xf32> to vector<8x32xbf16>
    %77 = tpu.concatenate %75, %76 in 1 : vector<8x32xbf16>, vector<8x32xbf16> -> vector<8x64xbf16>
    %cst_32 = arith.constant dense<0.000000e+00> : vector<8x128xf32>
    %78 = tpu.matmul %77, %32, %cst_32 {dimension_numbers = #tpu.dot_dimension_numbers<[1], [0], [0], [1], [0, 0, 1, 1], [], []>} : vector<8x64xbf16>, vector<64x128xbf16>, vector<8x128xf32> -> vector<8x128xf32>
    %79 = vector.broadcast %33 : vector<1x128xf32> to vector<8x128xf32>
    %80 = arith.addf %78, %79 : vector<8x128xf32>
    %81 = arith.mulf %80, %24 : vector<8x128xf32>
    %82 = math.tanh %81 : vector<8x128xf32>
    %cst_33 = arith.constant 1.000000e+00 : f32
    %83 = vector.broadcast %cst_33 : f32 to vector<8x128xf32>
    %84 = arith.addf %82, %83 : vector<8x128xf32>
    %cst_34 = arith.constant 5.000000e-01 : f32
    %85 = vector.broadcast %cst_34 : f32 to vector<8x128xf32>
    %86 = arith.mulf %85, %84 : vector<8x128xf32>
    %87 = arith.select %21, %82, %86 : vector<8x128xi1>, vector<8x128xf32>
    %88 = vector.extract_strided_slice %87 {offsets = [0, 0], sizes = [8, 32], strides = [1, 1]} : vector<8x128xf32> to vector<8x32xf32>
    %89 = vector.extract_strided_slice %87 {offsets = [0, 32], sizes = [8, 32], strides = [1, 1]} : vector<8x128xf32> to vector<8x32xf32>
    %90 = vector.extract_strided_slice %87 {offsets = [0, 64], sizes = [8, 32], strides = [1, 1]} : vector<8x128xf32> to vector<8x32xf32>
    %91 = vector.extract_strided_slice %87 {offsets = [0, 96], sizes = [8, 32], strides = [1, 1]} : vector<8x128xf32> to vector<8x32xf32>
    %92 = arith.mulf %89, %34 : vector<8x32xf32>
    %93 = arith.mulf %88, %90 : vector<8x32xf32>
    %94 = arith.addf %92, %93 : vector<8x32xf32>
    %95 = math.tanh %94 : vector<8x32xf32>
    %96 = arith.mulf %91, %95 : vector<8x32xf32>
    %97 = vector.extract_strided_slice %30 {offsets = [16, 0], sizes = [8, 128], strides = [1, 1]} : vector<64x128xf32> to vector<8x128xf32>
    %98 = arith.truncf %74 : vector<8x32xf32> to vector<8x32xbf16>
    %cst_35 = arith.constant dense<0.000000e+00> : vector<8x128xf32>
    %99 = tpu.matmul %98, %31, %cst_35 {dimension_numbers = #tpu.dot_dimension_numbers<[1], [0], [0], [1], [0, 0, 1, 1], [], []>} : vector<8x32xbf16>, vector<32x128xbf16>, vector<8x128xf32> -> vector<8x128xf32>
    %100 = arith.addf %97, %99 : vector<8x128xf32>
    %101 = arith.mulf %100, %24 : vector<8x128xf32>
    %102 = math.tanh %101 : vector<8x128xf32>
    %cst_36 = arith.constant 1.000000e+00 : f32
    %103 = vector.broadcast %cst_36 : f32 to vector<8x128xf32>
    %104 = arith.addf %102, %103 : vector<8x128xf32>
    %cst_37 = arith.constant 5.000000e-01 : f32
    %105 = vector.broadcast %cst_37 : f32 to vector<8x128xf32>
    %106 = arith.mulf %105, %104 : vector<8x128xf32>
    %107 = arith.select %21, %102, %106 : vector<8x128xi1>, vector<8x128xf32>
    %108 = vector.extract_strided_slice %107 {offsets = [0, 0], sizes = [8, 32], strides = [1, 1]} : vector<8x128xf32> to vector<8x32xf32>
    %109 = vector.extract_strided_slice %107 {offsets = [0, 32], sizes = [8, 32], strides = [1, 1]} : vector<8x128xf32> to vector<8x32xf32>
    %110 = vector.extract_strided_slice %107 {offsets = [0, 64], sizes = [8, 32], strides = [1, 1]} : vector<8x128xf32> to vector<8x32xf32>
    %111 = vector.extract_strided_slice %107 {offsets = [0, 96], sizes = [8, 32], strides = [1, 1]} : vector<8x128xf32> to vector<8x32xf32>
    %112 = arith.mulf %109, %72 : vector<8x32xf32>
    %113 = arith.mulf %108, %110 : vector<8x32xf32>
    %114 = arith.addf %112, %113 : vector<8x32xf32>
    %115 = math.tanh %114 : vector<8x32xf32>
    %116 = arith.mulf %111, %115 : vector<8x32xf32>
    %117 = arith.truncf %74 : vector<8x32xf32> to vector<8x32xbf16>
    %118 = arith.truncf %96 : vector<8x32xf32> to vector<8x32xbf16>
    %119 = tpu.concatenate %117, %118 in 1 : vector<8x32xbf16>, vector<8x32xbf16> -> vector<8x64xbf16>
    %cst_38 = arith.constant dense<0.000000e+00> : vector<8x128xf32>
    %120 = tpu.matmul %119, %32, %cst_38 {dimension_numbers = #tpu.dot_dimension_numbers<[1], [0], [0], [1], [0, 0, 1, 1], [], []>} : vector<8x64xbf16>, vector<64x128xbf16>, vector<8x128xf32> -> vector<8x128xf32>
    %121 = vector.broadcast %33 : vector<1x128xf32> to vector<8x128xf32>
    %122 = arith.addf %120, %121 : vector<8x128xf32>
    %123 = arith.mulf %122, %24 : vector<8x128xf32>
    %124 = math.tanh %123 : vector<8x128xf32>
    %cst_39 = arith.constant 1.000000e+00 : f32
    %125 = vector.broadcast %cst_39 : f32 to vector<8x128xf32>
    %126 = arith.addf %124, %125 : vector<8x128xf32>
    %cst_40 = arith.constant 5.000000e-01 : f32
    %127 = vector.broadcast %cst_40 : f32 to vector<8x128xf32>
    %128 = arith.mulf %127, %126 : vector<8x128xf32>
    %129 = arith.select %21, %124, %128 : vector<8x128xi1>, vector<8x128xf32>
    %130 = vector.extract_strided_slice %129 {offsets = [0, 0], sizes = [8, 32], strides = [1, 1]} : vector<8x128xf32> to vector<8x32xf32>
    %131 = vector.extract_strided_slice %129 {offsets = [0, 32], sizes = [8, 32], strides = [1, 1]} : vector<8x128xf32> to vector<8x32xf32>
    %132 = vector.extract_strided_slice %129 {offsets = [0, 64], sizes = [8, 32], strides = [1, 1]} : vector<8x128xf32> to vector<8x32xf32>
    %133 = vector.extract_strided_slice %129 {offsets = [0, 96], sizes = [8, 32], strides = [1, 1]} : vector<8x128xf32> to vector<8x32xf32>
    %134 = arith.mulf %131, %94 : vector<8x32xf32>
    %135 = arith.mulf %130, %132 : vector<8x32xf32>
    %136 = arith.addf %134, %135 : vector<8x32xf32>
    %137 = math.tanh %136 : vector<8x32xf32>
    %138 = arith.mulf %133, %137 : vector<8x32xf32>
    %139 = vector.extract_strided_slice %30 {offsets = [24, 0], sizes = [8, 128], strides = [1, 1]} : vector<64x128xf32> to vector<8x128xf32>
    %140 = arith.truncf %116 : vector<8x32xf32> to vector<8x32xbf16>
    %cst_41 = arith.constant dense<0.000000e+00> : vector<8x128xf32>
    %141 = tpu.matmul %140, %31, %cst_41 {dimension_numbers = #tpu.dot_dimension_numbers<[1], [0], [0], [1], [0, 0, 1, 1], [], []>} : vector<8x32xbf16>, vector<32x128xbf16>, vector<8x128xf32> -> vector<8x128xf32>
    %142 = arith.addf %139, %141 : vector<8x128xf32>
    %143 = arith.mulf %142, %24 : vector<8x128xf32>
    %144 = math.tanh %143 : vector<8x128xf32>
    %cst_42 = arith.constant 1.000000e+00 : f32
    %145 = vector.broadcast %cst_42 : f32 to vector<8x128xf32>
    %146 = arith.addf %144, %145 : vector<8x128xf32>
    %cst_43 = arith.constant 5.000000e-01 : f32
    %147 = vector.broadcast %cst_43 : f32 to vector<8x128xf32>
    %148 = arith.mulf %147, %146 : vector<8x128xf32>
    %149 = arith.select %21, %144, %148 : vector<8x128xi1>, vector<8x128xf32>
    %150 = vector.extract_strided_slice %149 {offsets = [0, 0], sizes = [8, 32], strides = [1, 1]} : vector<8x128xf32> to vector<8x32xf32>
    %151 = vector.extract_strided_slice %149 {offsets = [0, 32], sizes = [8, 32], strides = [1, 1]} : vector<8x128xf32> to vector<8x32xf32>
    %152 = vector.extract_strided_slice %149 {offsets = [0, 64], sizes = [8, 32], strides = [1, 1]} : vector<8x128xf32> to vector<8x32xf32>
    %153 = vector.extract_strided_slice %149 {offsets = [0, 96], sizes = [8, 32], strides = [1, 1]} : vector<8x128xf32> to vector<8x32xf32>
    %154 = arith.mulf %151, %114 : vector<8x32xf32>
    %155 = arith.mulf %150, %152 : vector<8x32xf32>
    %156 = arith.addf %154, %155 : vector<8x32xf32>
    %157 = math.tanh %156 : vector<8x32xf32>
    %158 = arith.mulf %153, %157 : vector<8x32xf32>
    %159 = arith.truncf %116 : vector<8x32xf32> to vector<8x32xbf16>
    %160 = arith.truncf %138 : vector<8x32xf32> to vector<8x32xbf16>
    %161 = tpu.concatenate %159, %160 in 1 : vector<8x32xbf16>, vector<8x32xbf16> -> vector<8x64xbf16>
    %cst_44 = arith.constant dense<0.000000e+00> : vector<8x128xf32>
    %162 = tpu.matmul %161, %32, %cst_44 {dimension_numbers = #tpu.dot_dimension_numbers<[1], [0], [0], [1], [0, 0, 1, 1], [], []>} : vector<8x64xbf16>, vector<64x128xbf16>, vector<8x128xf32> -> vector<8x128xf32>
    %163 = vector.broadcast %33 : vector<1x128xf32> to vector<8x128xf32>
    %164 = arith.addf %162, %163 : vector<8x128xf32>
    %165 = arith.mulf %164, %24 : vector<8x128xf32>
    %166 = math.tanh %165 : vector<8x128xf32>
    %cst_45 = arith.constant 1.000000e+00 : f32
    %167 = vector.broadcast %cst_45 : f32 to vector<8x128xf32>
    %168 = arith.addf %166, %167 : vector<8x128xf32>
    %cst_46 = arith.constant 5.000000e-01 : f32
    %169 = vector.broadcast %cst_46 : f32 to vector<8x128xf32>
    %170 = arith.mulf %169, %168 : vector<8x128xf32>
    %171 = arith.select %21, %166, %170 : vector<8x128xi1>, vector<8x128xf32>
    %172 = vector.extract_strided_slice %171 {offsets = [0, 0], sizes = [8, 32], strides = [1, 1]} : vector<8x128xf32> to vector<8x32xf32>
    %173 = vector.extract_strided_slice %171 {offsets = [0, 32], sizes = [8, 32], strides = [1, 1]} : vector<8x128xf32> to vector<8x32xf32>
    %174 = vector.extract_strided_slice %171 {offsets = [0, 64], sizes = [8, 32], strides = [1, 1]} : vector<8x128xf32> to vector<8x32xf32>
    %175 = vector.extract_strided_slice %171 {offsets = [0, 96], sizes = [8, 32], strides = [1, 1]} : vector<8x128xf32> to vector<8x32xf32>
    %176 = arith.mulf %173, %136 : vector<8x32xf32>
    %177 = arith.mulf %172, %174 : vector<8x32xf32>
    %178 = arith.addf %176, %177 : vector<8x32xf32>
    %179 = math.tanh %178 : vector<8x32xf32>
    %180 = arith.mulf %175, %179 : vector<8x32xf32>
    %181 = vector.extract_strided_slice %30 {offsets = [32, 0], sizes = [8, 128], strides = [1, 1]} : vector<64x128xf32> to vector<8x128xf32>
    %182 = arith.truncf %158 : vector<8x32xf32> to vector<8x32xbf16>
    %cst_47 = arith.constant dense<0.000000e+00> : vector<8x128xf32>
    %183 = tpu.matmul %182, %31, %cst_47 {dimension_numbers = #tpu.dot_dimension_numbers<[1], [0], [0], [1], [0, 0, 1, 1], [], []>} : vector<8x32xbf16>, vector<32x128xbf16>, vector<8x128xf32> -> vector<8x128xf32>
    %184 = arith.addf %181, %183 : vector<8x128xf32>
    %185 = arith.mulf %184, %24 : vector<8x128xf32>
    %186 = math.tanh %185 : vector<8x128xf32>
    %cst_48 = arith.constant 1.000000e+00 : f32
    %187 = vector.broadcast %cst_48 : f32 to vector<8x128xf32>
    %188 = arith.addf %186, %187 : vector<8x128xf32>
    %cst_49 = arith.constant 5.000000e-01 : f32
    %189 = vector.broadcast %cst_49 : f32 to vector<8x128xf32>
    %190 = arith.mulf %189, %188 : vector<8x128xf32>
    %191 = arith.select %21, %186, %190 : vector<8x128xi1>, vector<8x128xf32>
    %192 = vector.extract_strided_slice %191 {offsets = [0, 0], sizes = [8, 32], strides = [1, 1]} : vector<8x128xf32> to vector<8x32xf32>
    %193 = vector.extract_strided_slice %191 {offsets = [0, 32], sizes = [8, 32], strides = [1, 1]} : vector<8x128xf32> to vector<8x32xf32>
    %194 = vector.extract_strided_slice %191 {offsets = [0, 64], sizes = [8, 32], strides = [1, 1]} : vector<8x128xf32> to vector<8x32xf32>
    %195 = vector.extract_strided_slice %191 {offsets = [0, 96], sizes = [8, 32], strides = [1, 1]} : vector<8x128xf32> to vector<8x32xf32>
    %196 = arith.mulf %193, %156 : vector<8x32xf32>
    %197 = arith.mulf %192, %194 : vector<8x32xf32>
    %198 = arith.addf %196, %197 : vector<8x32xf32>
    %199 = math.tanh %198 : vector<8x32xf32>
    %200 = arith.mulf %195, %199 : vector<8x32xf32>
    %201 = arith.truncf %158 : vector<8x32xf32> to vector<8x32xbf16>
    %202 = arith.truncf %180 : vector<8x32xf32> to vector<8x32xbf16>
    %203 = tpu.concatenate %201, %202 in 1 : vector<8x32xbf16>, vector<8x32xbf16> -> vector<8x64xbf16>
    %cst_50 = arith.constant dense<0.000000e+00> : vector<8x128xf32>
    %204 = tpu.matmul %203, %32, %cst_50 {dimension_numbers = #tpu.dot_dimension_numbers<[1], [0], [0], [1], [0, 0, 1, 1], [], []>} : vector<8x64xbf16>, vector<64x128xbf16>, vector<8x128xf32> -> vector<8x128xf32>
    %205 = vector.broadcast %33 : vector<1x128xf32> to vector<8x128xf32>
    %206 = arith.addf %204, %205 : vector<8x128xf32>
    %207 = arith.mulf %206, %24 : vector<8x128xf32>
    %208 = math.tanh %207 : vector<8x128xf32>
    %cst_51 = arith.constant 1.000000e+00 : f32
    %209 = vector.broadcast %cst_51 : f32 to vector<8x128xf32>
    %210 = arith.addf %208, %209 : vector<8x128xf32>
    %cst_52 = arith.constant 5.000000e-01 : f32
    %211 = vector.broadcast %cst_52 : f32 to vector<8x128xf32>
    %212 = arith.mulf %211, %210 : vector<8x128xf32>
    %213 = arith.select %21, %208, %212 : vector<8x128xi1>, vector<8x128xf32>
    %214 = vector.extract_strided_slice %213 {offsets = [0, 0], sizes = [8, 32], strides = [1, 1]} : vector<8x128xf32> to vector<8x32xf32>
    %215 = vector.extract_strided_slice %213 {offsets = [0, 32], sizes = [8, 32], strides = [1, 1]} : vector<8x128xf32> to vector<8x32xf32>
    %216 = vector.extract_strided_slice %213 {offsets = [0, 64], sizes = [8, 32], strides = [1, 1]} : vector<8x128xf32> to vector<8x32xf32>
    %217 = vector.extract_strided_slice %213 {offsets = [0, 96], sizes = [8, 32], strides = [1, 1]} : vector<8x128xf32> to vector<8x32xf32>
    %218 = arith.mulf %215, %178 : vector<8x32xf32>
    %219 = arith.mulf %214, %216 : vector<8x32xf32>
    %220 = arith.addf %218, %219 : vector<8x32xf32>
    %221 = math.tanh %220 : vector<8x32xf32>
    %222 = arith.mulf %217, %221 : vector<8x32xf32>
    %223 = vector.extract_strided_slice %30 {offsets = [40, 0], sizes = [8, 128], strides = [1, 1]} : vector<64x128xf32> to vector<8x128xf32>
    %224 = arith.truncf %200 : vector<8x32xf32> to vector<8x32xbf16>
    %cst_53 = arith.constant dense<0.000000e+00> : vector<8x128xf32>
    %225 = tpu.matmul %224, %31, %cst_53 {dimension_numbers = #tpu.dot_dimension_numbers<[1], [0], [0], [1], [0, 0, 1, 1], [], []>} : vector<8x32xbf16>, vector<32x128xbf16>, vector<8x128xf32> -> vector<8x128xf32>
    %226 = arith.addf %223, %225 : vector<8x128xf32>
    %227 = arith.mulf %226, %24 : vector<8x128xf32>
    %228 = math.tanh %227 : vector<8x128xf32>
    %cst_54 = arith.constant 1.000000e+00 : f32
    %229 = vector.broadcast %cst_54 : f32 to vector<8x128xf32>
    %230 = arith.addf %228, %229 : vector<8x128xf32>
    %cst_55 = arith.constant 5.000000e-01 : f32
    %231 = vector.broadcast %cst_55 : f32 to vector<8x128xf32>
    %232 = arith.mulf %231, %230 : vector<8x128xf32>
    %233 = arith.select %21, %228, %232 : vector<8x128xi1>, vector<8x128xf32>
    %234 = vector.extract_strided_slice %233 {offsets = [0, 0], sizes = [8, 32], strides = [1, 1]} : vector<8x128xf32> to vector<8x32xf32>
    %235 = vector.extract_strided_slice %233 {offsets = [0, 32], sizes = [8, 32], strides = [1, 1]} : vector<8x128xf32> to vector<8x32xf32>
    %236 = vector.extract_strided_slice %233 {offsets = [0, 64], sizes = [8, 32], strides = [1, 1]} : vector<8x128xf32> to vector<8x32xf32>
    %237 = vector.extract_strided_slice %233 {offsets = [0, 96], sizes = [8, 32], strides = [1, 1]} : vector<8x128xf32> to vector<8x32xf32>
    %238 = arith.mulf %235, %198 : vector<8x32xf32>
    %239 = arith.mulf %234, %236 : vector<8x32xf32>
    %240 = arith.addf %238, %239 : vector<8x32xf32>
    %241 = math.tanh %240 : vector<8x32xf32>
    %242 = arith.mulf %237, %241 : vector<8x32xf32>
    %243 = arith.truncf %200 : vector<8x32xf32> to vector<8x32xbf16>
    %244 = arith.truncf %222 : vector<8x32xf32> to vector<8x32xbf16>
    %245 = tpu.concatenate %243, %244 in 1 : vector<8x32xbf16>, vector<8x32xbf16> -> vector<8x64xbf16>
    %cst_56 = arith.constant dense<0.000000e+00> : vector<8x128xf32>
    %246 = tpu.matmul %245, %32, %cst_56 {dimension_numbers = #tpu.dot_dimension_numbers<[1], [0], [0], [1], [0, 0, 1, 1], [], []>} : vector<8x64xbf16>, vector<64x128xbf16>, vector<8x128xf32> -> vector<8x128xf32>
    %247 = vector.broadcast %33 : vector<1x128xf32> to vector<8x128xf32>
    %248 = arith.addf %246, %247 : vector<8x128xf32>
    %249 = arith.mulf %248, %24 : vector<8x128xf32>
    %250 = math.tanh %249 : vector<8x128xf32>
    %cst_57 = arith.constant 1.000000e+00 : f32
    %251 = vector.broadcast %cst_57 : f32 to vector<8x128xf32>
    %252 = arith.addf %250, %251 : vector<8x128xf32>
    %cst_58 = arith.constant 5.000000e-01 : f32
    %253 = vector.broadcast %cst_58 : f32 to vector<8x128xf32>
    %254 = arith.mulf %253, %252 : vector<8x128xf32>
    %255 = arith.select %21, %250, %254 : vector<8x128xi1>, vector<8x128xf32>
    %256 = vector.extract_strided_slice %255 {offsets = [0, 0], sizes = [8, 32], strides = [1, 1]} : vector<8x128xf32> to vector<8x32xf32>
    %257 = vector.extract_strided_slice %255 {offsets = [0, 32], sizes = [8, 32], strides = [1, 1]} : vector<8x128xf32> to vector<8x32xf32>
    %258 = vector.extract_strided_slice %255 {offsets = [0, 64], sizes = [8, 32], strides = [1, 1]} : vector<8x128xf32> to vector<8x32xf32>
    %259 = vector.extract_strided_slice %255 {offsets = [0, 96], sizes = [8, 32], strides = [1, 1]} : vector<8x128xf32> to vector<8x32xf32>
    %260 = arith.mulf %257, %220 : vector<8x32xf32>
    %261 = arith.mulf %256, %258 : vector<8x32xf32>
    %262 = arith.addf %260, %261 : vector<8x32xf32>
    %263 = math.tanh %262 : vector<8x32xf32>
    %264 = arith.mulf %259, %263 : vector<8x32xf32>
    %265 = vector.extract_strided_slice %30 {offsets = [48, 0], sizes = [8, 128], strides = [1, 1]} : vector<64x128xf32> to vector<8x128xf32>
    %266 = arith.truncf %242 : vector<8x32xf32> to vector<8x32xbf16>
    %cst_59 = arith.constant dense<0.000000e+00> : vector<8x128xf32>
    %267 = tpu.matmul %266, %31, %cst_59 {dimension_numbers = #tpu.dot_dimension_numbers<[1], [0], [0], [1], [0, 0, 1, 1], [], []>} : vector<8x32xbf16>, vector<32x128xbf16>, vector<8x128xf32> -> vector<8x128xf32>
    %268 = arith.addf %265, %267 : vector<8x128xf32>
    %269 = arith.mulf %268, %24 : vector<8x128xf32>
    %270 = math.tanh %269 : vector<8x128xf32>
    %cst_60 = arith.constant 1.000000e+00 : f32
    %271 = vector.broadcast %cst_60 : f32 to vector<8x128xf32>
    %272 = arith.addf %270, %271 : vector<8x128xf32>
    %cst_61 = arith.constant 5.000000e-01 : f32
    %273 = vector.broadcast %cst_61 : f32 to vector<8x128xf32>
    %274 = arith.mulf %273, %272 : vector<8x128xf32>
    %275 = arith.select %21, %270, %274 : vector<8x128xi1>, vector<8x128xf32>
    %276 = vector.extract_strided_slice %275 {offsets = [0, 0], sizes = [8, 32], strides = [1, 1]} : vector<8x128xf32> to vector<8x32xf32>
    %277 = vector.extract_strided_slice %275 {offsets = [0, 32], sizes = [8, 32], strides = [1, 1]} : vector<8x128xf32> to vector<8x32xf32>
    %278 = vector.extract_strided_slice %275 {offsets = [0, 64], sizes = [8, 32], strides = [1, 1]} : vector<8x128xf32> to vector<8x32xf32>
    %279 = vector.extract_strided_slice %275 {offsets = [0, 96], sizes = [8, 32], strides = [1, 1]} : vector<8x128xf32> to vector<8x32xf32>
    %280 = arith.mulf %277, %240 : vector<8x32xf32>
    %281 = arith.mulf %276, %278 : vector<8x32xf32>
    %282 = arith.addf %280, %281 : vector<8x32xf32>
    %283 = math.tanh %282 : vector<8x32xf32>
    %284 = arith.mulf %279, %283 : vector<8x32xf32>
    %285 = arith.truncf %242 : vector<8x32xf32> to vector<8x32xbf16>
    %286 = arith.truncf %264 : vector<8x32xf32> to vector<8x32xbf16>
    %287 = tpu.concatenate %285, %286 in 1 : vector<8x32xbf16>, vector<8x32xbf16> -> vector<8x64xbf16>
    %cst_62 = arith.constant dense<0.000000e+00> : vector<8x128xf32>
    %288 = tpu.matmul %287, %32, %cst_62 {dimension_numbers = #tpu.dot_dimension_numbers<[1], [0], [0], [1], [0, 0, 1, 1], [], []>} : vector<8x64xbf16>, vector<64x128xbf16>, vector<8x128xf32> -> vector<8x128xf32>
    %289 = vector.broadcast %33 : vector<1x128xf32> to vector<8x128xf32>
    %290 = arith.addf %288, %289 : vector<8x128xf32>
    %291 = arith.mulf %290, %24 : vector<8x128xf32>
    %292 = math.tanh %291 : vector<8x128xf32>
    %cst_63 = arith.constant 1.000000e+00 : f32
    %293 = vector.broadcast %cst_63 : f32 to vector<8x128xf32>
    %294 = arith.addf %292, %293 : vector<8x128xf32>
    %cst_64 = arith.constant 5.000000e-01 : f32
    %295 = vector.broadcast %cst_64 : f32 to vector<8x128xf32>
    %296 = arith.mulf %295, %294 : vector<8x128xf32>
    %297 = arith.select %21, %292, %296 : vector<8x128xi1>, vector<8x128xf32>
    %298 = vector.extract_strided_slice %297 {offsets = [0, 0], sizes = [8, 32], strides = [1, 1]} : vector<8x128xf32> to vector<8x32xf32>
    %299 = vector.extract_strided_slice %297 {offsets = [0, 32], sizes = [8, 32], strides = [1, 1]} : vector<8x128xf32> to vector<8x32xf32>
    %300 = vector.extract_strided_slice %297 {offsets = [0, 64], sizes = [8, 32], strides = [1, 1]} : vector<8x128xf32> to vector<8x32xf32>
    %301 = vector.extract_strided_slice %297 {offsets = [0, 96], sizes = [8, 32], strides = [1, 1]} : vector<8x128xf32> to vector<8x32xf32>
    %302 = arith.mulf %299, %262 : vector<8x32xf32>
    %303 = arith.mulf %298, %300 : vector<8x32xf32>
    %304 = arith.addf %302, %303 : vector<8x32xf32>
    %305 = math.tanh %304 : vector<8x32xf32>
    %306 = arith.mulf %301, %305 : vector<8x32xf32>
    %307 = vector.extract_strided_slice %30 {offsets = [56, 0], sizes = [8, 128], strides = [1, 1]} : vector<64x128xf32> to vector<8x128xf32>
    %308 = arith.truncf %284 : vector<8x32xf32> to vector<8x32xbf16>
    %cst_65 = arith.constant dense<0.000000e+00> : vector<8x128xf32>
    %309 = tpu.matmul %308, %31, %cst_65 {dimension_numbers = #tpu.dot_dimension_numbers<[1], [0], [0], [1], [0, 0, 1, 1], [], []>} : vector<8x32xbf16>, vector<32x128xbf16>, vector<8x128xf32> -> vector<8x128xf32>
    %310 = arith.addf %307, %309 : vector<8x128xf32>
    %311 = arith.mulf %310, %24 : vector<8x128xf32>
    %312 = math.tanh %311 : vector<8x128xf32>
    %cst_66 = arith.constant 1.000000e+00 : f32
    %313 = vector.broadcast %cst_66 : f32 to vector<8x128xf32>
    %314 = arith.addf %312, %313 : vector<8x128xf32>
    %cst_67 = arith.constant 5.000000e-01 : f32
    %315 = vector.broadcast %cst_67 : f32 to vector<8x128xf32>
    %316 = arith.mulf %315, %314 : vector<8x128xf32>
    %317 = arith.select %21, %312, %316 : vector<8x128xi1>, vector<8x128xf32>
    %318 = vector.extract_strided_slice %317 {offsets = [0, 0], sizes = [8, 32], strides = [1, 1]} : vector<8x128xf32> to vector<8x32xf32>
    %319 = vector.extract_strided_slice %317 {offsets = [0, 32], sizes = [8, 32], strides = [1, 1]} : vector<8x128xf32> to vector<8x32xf32>
    %320 = vector.extract_strided_slice %317 {offsets = [0, 64], sizes = [8, 32], strides = [1, 1]} : vector<8x128xf32> to vector<8x32xf32>
    %321 = vector.extract_strided_slice %317 {offsets = [0, 96], sizes = [8, 32], strides = [1, 1]} : vector<8x128xf32> to vector<8x32xf32>
    %322 = arith.mulf %319, %282 : vector<8x32xf32>
    %323 = arith.mulf %318, %320 : vector<8x32xf32>
    %324 = arith.addf %322, %323 : vector<8x32xf32>
    %325 = math.tanh %324 : vector<8x32xf32>
    %326 = arith.mulf %321, %325 : vector<8x32xf32>
    %327 = arith.truncf %284 : vector<8x32xf32> to vector<8x32xbf16>
    %328 = arith.truncf %306 : vector<8x32xf32> to vector<8x32xbf16>
    %329 = tpu.concatenate %327, %328 in 1 : vector<8x32xbf16>, vector<8x32xbf16> -> vector<8x64xbf16>
    %cst_68 = arith.constant dense<0.000000e+00> : vector<8x128xf32>
    %330 = tpu.matmul %329, %32, %cst_68 {dimension_numbers = #tpu.dot_dimension_numbers<[1], [0], [0], [1], [0, 0, 1, 1], [], []>} : vector<8x64xbf16>, vector<64x128xbf16>, vector<8x128xf32> -> vector<8x128xf32>
    %331 = vector.broadcast %33 : vector<1x128xf32> to vector<8x128xf32>
    %332 = arith.addf %330, %331 : vector<8x128xf32>
    %333 = arith.mulf %332, %24 : vector<8x128xf32>
    %334 = math.tanh %333 : vector<8x128xf32>
    %cst_69 = arith.constant 1.000000e+00 : f32
    %335 = vector.broadcast %cst_69 : f32 to vector<8x128xf32>
    %336 = arith.addf %334, %335 : vector<8x128xf32>
    %cst_70 = arith.constant 5.000000e-01 : f32
    %337 = vector.broadcast %cst_70 : f32 to vector<8x128xf32>
    %338 = arith.mulf %337, %336 : vector<8x128xf32>
    %339 = arith.select %21, %334, %338 : vector<8x128xi1>, vector<8x128xf32>
    %340 = vector.extract_strided_slice %339 {offsets = [0, 0], sizes = [8, 32], strides = [1, 1]} : vector<8x128xf32> to vector<8x32xf32>
    %341 = vector.extract_strided_slice %339 {offsets = [0, 32], sizes = [8, 32], strides = [1, 1]} : vector<8x128xf32> to vector<8x32xf32>
    %342 = vector.extract_strided_slice %339 {offsets = [0, 64], sizes = [8, 32], strides = [1, 1]} : vector<8x128xf32> to vector<8x32xf32>
    %343 = vector.extract_strided_slice %339 {offsets = [0, 96], sizes = [8, 32], strides = [1, 1]} : vector<8x128xf32> to vector<8x32xf32>
    %344 = arith.mulf %341, %304 : vector<8x32xf32>
    %345 = arith.mulf %340, %342 : vector<8x32xf32>
    %346 = arith.addf %344, %345 : vector<8x32xf32>
    %347 = math.tanh %346 : vector<8x32xf32>
    %348 = arith.mulf %343, %347 : vector<8x32xf32>
    %349 = arith.truncf %326 : vector<8x32xf32> to vector<8x32xbf16>
    %350 = arith.truncf %348 : vector<8x32xf32> to vector<8x32xbf16>
    %351 = tpu.concatenate %349, %350 in 1 : vector<8x32xbf16>, vector<8x32xbf16> -> vector<8x64xbf16>
    %cst_71 = arith.constant dense<0.000000e+00> : vector<8x128xf32>
    %352 = tpu.matmul %351, %32, %cst_71 {dimension_numbers = #tpu.dot_dimension_numbers<[1], [0], [0], [1], [0, 0, 1, 1], [], []>} : vector<8x64xbf16>, vector<64x128xbf16>, vector<8x128xf32> -> vector<8x128xf32>
    %353 = vector.broadcast %33 : vector<1x128xf32> to vector<8x128xf32>
    %354 = arith.addf %352, %353 : vector<8x128xf32>
    %355 = arith.mulf %354, %24 : vector<8x128xf32>
    %356 = math.tanh %355 : vector<8x128xf32>
    %cst_72 = arith.constant 1.000000e+00 : f32
    %357 = vector.broadcast %cst_72 : f32 to vector<8x128xf32>
    %358 = arith.addf %356, %357 : vector<8x128xf32>
    %cst_73 = arith.constant 5.000000e-01 : f32
    %359 = vector.broadcast %cst_73 : f32 to vector<8x128xf32>
    %360 = arith.mulf %359, %358 : vector<8x128xf32>
    %361 = arith.select %21, %356, %360 : vector<8x128xi1>, vector<8x128xf32>
    %362 = vector.extract_strided_slice %361 {offsets = [0, 0], sizes = [8, 32], strides = [1, 1]} : vector<8x128xf32> to vector<8x32xf32>
    %363 = vector.extract_strided_slice %361 {offsets = [0, 32], sizes = [8, 32], strides = [1, 1]} : vector<8x128xf32> to vector<8x32xf32>
    %364 = vector.extract_strided_slice %361 {offsets = [0, 64], sizes = [8, 32], strides = [1, 1]} : vector<8x128xf32> to vector<8x32xf32>
    %365 = vector.extract_strided_slice %361 {offsets = [0, 96], sizes = [8, 32], strides = [1, 1]} : vector<8x128xf32> to vector<8x32xf32>
    %366 = arith.mulf %363, %346 : vector<8x32xf32>
    %367 = arith.mulf %362, %364 : vector<8x32xf32>
    %368 = arith.addf %366, %367 : vector<8x32xf32>
    %369 = math.tanh %368 : vector<8x32xf32>
    %370 = arith.mulf %365, %369 : vector<8x32xf32>
    %371 = tpu.concatenate %96, %138, %180, %222, %264, %306, %348, %370 in 0 : vector<8x32xf32>, vector<8x32xf32>, vector<8x32xf32>, vector<8x32xf32>, vector<8x32xf32>, vector<8x32xf32>, vector<8x32xf32>, vector<8x32xf32> -> vector<64x32xf32>
    %372 = arith.truncf %371 : vector<64x32xf32> to vector<64x32xbf16>
    %c0_74 = arith.constant 0 : index
    %c0_75 = arith.constant 0 : index
    %373 = vector.load %arg11[%c0_74, %c0_75] : memref<32x32xbf16, #tpu.memory_space<vmem>>, vector<32x32xbf16>
    %cst_76 = arith.constant dense<0.000000e+00> : vector<64x32xf32>
    %374 = tpu.matmul %372, %373, %cst_76 {dimension_numbers = #tpu.dot_dimension_numbers<[1], [0], [0], [1], [0, 0, 1, 1], [], []>} : vector<64x32xbf16>, vector<32x32xbf16>, vector<64x32xf32> -> vector<64x32xf32>
    %c0_77 = arith.constant 0 : index
    %c0_78 = arith.constant 0 : index
    %375 = vector.load %arg12[%c0_77, %c0_78] : memref<1x32xf32, #tpu.memory_space<vmem>>, vector<1x32xf32>
    %376 = vector.broadcast %375 : vector<1x32xf32> to vector<64x32xf32>
    %377 = arith.addf %374, %376 : vector<64x32xf32>
    %cst_79 = arith.constant 0.000000e+00 : f32
    %378 = vector.broadcast %cst_79 : f32 to vector<64x32xf32>
    %379 = arith.maximumf %377, %378 : vector<64x32xf32>
    %380 = arith.truncf %379 : vector<64x32xf32> to vector<64x32xbf16>
    %c0_80 = arith.constant 0 : index
    %c0_81 = arith.constant 0 : index
    %381 = vector.load %arg13[%c0_80, %c0_81] : memref<32x128xbf16, #tpu.memory_space<vmem>>, vector<32x128xbf16>
    %cst_82 = arith.constant dense<0.000000e+00> : vector<64x128xf32>
    %382 = tpu.matmul %380, %381, %cst_82 {dimension_numbers = #tpu.dot_dimension_numbers<[1], [0], [0], [1], [0, 0, 1, 1], [], []>} : vector<64x32xbf16>, vector<32x128xbf16>, vector<64x128xf32> -> vector<64x128xf32>
    %c0_83 = arith.constant 0 : index
    %c0_84 = arith.constant 0 : index
    %383 = vector.load %arg14[%c0_83, %c0_84] : memref<1x128xf32, #tpu.memory_space<vmem>>, vector<1x128xf32>
    %384 = vector.broadcast %383 : vector<1x128xf32> to vector<64x128xf32>
    %385 = arith.addf %382, %384 : vector<64x128xf32>
    %c0_85 = arith.constant 0 : index
    %c0_86 = arith.constant 0 : index
    %c0_87 = arith.constant 0 : index
    %386 = vector.load %arg15[%c0_85, %c0_86, %c0_87] : memref<1x64x128xf32, #tpu.memory_space<vmem>>, vector<1x64x128xf32>
    %387 = vector.shape_cast %386 : vector<1x64x128xf32> to vector<64x128xf32>
    %388 = vector.shape_cast %385 : vector<64x128xf32> to vector<1x64x128xf32>
    tpu.vector_store %arg15[%c0_85, %c0_86, %c0_87], %388 {strides = array<i32>} : memref<1x64x128xf32, #tpu.memory_space<vmem>>, vector<1x64x128xf32>,
    return
  }
  func.func @transform_0(%arg0: i32) -> (i32, i32, i32) {
    %c0_i32 = arith.constant 0 : i32
    %c0_i32_0 = arith.constant 0 : i32
    %c0_i32_1 = arith.constant 0 : i32
    return %arg0, %c0_i32, %c0_i32_0 : i32, i32, i32
  }
  func.func @transform_1(%arg0: i32) -> (i32, i32) {
    %c0_i32 = arith.constant 0 : i32
    %c0_i32_0 = arith.constant 0 : i32
    %c0_i32_1 = arith.constant 0 : i32
    return %c0_i32, %c0_i32_0 : i32, i32
  }
  func.func @transform_2(%arg0: i32) -> (i32, i32) {
    %c0_i32 = arith.constant 0 : i32
    %c0_i32_0 = arith.constant 0 : i32
    %c0_i32_1 = arith.constant 0 : i32
    return %c0_i32, %c0_i32_0 : i32, i32
  }
  func.func @transform_3(%arg0: i32) -> (i32, i32) {
    %c0_i32 = arith.constant 0 : i32
    %c0_i32_0 = arith.constant 0 : i32
    %c0_i32_1 = arith.constant 0 : i32
    return %c0_i32, %c0_i32_0 : i32, i32
  }
  func.func @transform_4(%arg0: i32) -> (i32, i32) {
    %c0_i32 = arith.constant 0 : i32
    %c0_i32_0 = arith.constant 0 : i32
    %c0_i32_1 = arith.constant 0 : i32
    return %c0_i32, %c0_i32_0 : i32, i32
  }
  func.func @transform_5(%arg0: i32) -> (i32, i32) {
    %c0_i32 = arith.constant 0 : i32
    %c0_i32_0 = arith.constant 0 : i32
    %c0_i32_1 = arith.constant 0 : i32
    return %c0_i32, %c0_i32_0 : i32, i32
  }
  func.func @transform_6(%arg0: i32) -> (i32, i32) {
    %c0_i32 = arith.constant 0 : i32
    %c0_i32_0 = arith.constant 0 : i32
    %c0_i32_1 = arith.constant 0 : i32
    return %c0_i32, %c0_i32_0 : i32, i32
  }
  func.func @transform_7(%arg0: i32) -> (i32, i32) {
    %c0_i32 = arith.constant 0 : i32
    %c0_i32_0 = arith.constant 0 : i32
    %c0_i32_1 = arith.constant 0 : i32
    return %c0_i32, %c0_i32_0 : i32, i32
  }
  func.func @transform_8(%arg0: i32) -> (i32, i32) {
    %c0_i32 = arith.constant 0 : i32
    %c0_i32_0 = arith.constant 0 : i32
    %c0_i32_1 = arith.constant 0 : i32
    return %c0_i32, %c0_i32_0 : i32, i32
  }
  func.func @transform_9(%arg0: i32) -> (i32, i32) {
    %c0_i32 = arith.constant 0 : i32
    %c0_i32_0 = arith.constant 0 : i32
    %c0_i32_1 = arith.constant 0 : i32
    return %c0_i32, %c0_i32_0 : i32, i32
  }
  func.func @transform_10(%arg0: i32) -> (i32, i32) {
    %c0_i32 = arith.constant 0 : i32
    %c0_i32_0 = arith.constant 0 : i32
    %c0_i32_1 = arith.constant 0 : i32
    return %c0_i32, %c0_i32_0 : i32, i32
  }
  func.func @transform_11(%arg0: i32) -> (i32, i32) {
    %c0_i32 = arith.constant 0 : i32
    %c0_i32_0 = arith.constant 0 : i32
    %c0_i32_1 = arith.constant 0 : i32
    return %c0_i32, %c0_i32_0 : i32, i32
  }
  func.func @transform_12(%arg0: i32) -> (i32, i32) {
    %c0_i32 = arith.constant 0 : i32
    %c0_i32_0 = arith.constant 0 : i32
    %c0_i32_1 = arith.constant 0 : i32
    return %c0_i32, %c0_i32_0 : i32, i32
  }
  func.func @transform_13(%arg0: i32) -> (i32, i32) {
    %c0_i32 = arith.constant 0 : i32
    %c0_i32_0 = arith.constant 0 : i32
    %c0_i32_1 = arith.constant 0 : i32
    return %c0_i32, %c0_i32_0 : i32, i32
  }
  func.func @transform_14(%arg0: i32) -> (i32, i32, i32) {
    %c0_i32 = arith.constant 0 : i32
    %c0_i32_0 = arith.constant 0 : i32
    %c0_i32_1 = arith.constant 0 : i32
    return %arg0, %c0_i32, %c0_i32_0 : i32, i32, i32
  }
}

</mosaic_0001>

<llo_original>
// kernel: tpu_custom_call.1
$region0: #{tpu_custom_call.1}
  #allocation0 [shape = 'u32[]', space=smem, size = 0x4, offset = 0x4, fixed_abs, tag = 'smem constant byte address 0x4 - core index']
  #allocation1 [shape = 'u32[144,128]{1,0:T(1,128)}', space=vmem, size = 0x12000, scoped, tag = 'internal scratch']
  %s0 = inlined_call_operand.vmem [shape: f32[1,64,16], index: 0, kind: input, shape index: {}]
  %s1 = inlined_call_operand.hbm [shape: bf16[16,32], index: 1, kind: input, shape index: {}]
  %s2 = inlined_call_operand.vmem [shape: f32[1,32], index: 2, kind: input, shape index: {}]
  %s3 = inlined_call_operand.vmem [shape: bf16[32,32], index: 3, kind: input, shape index: {}]
  %s4 = inlined_call_operand.vmem [shape: f32[1,32], index: 4, kind: input, shape index: {}]
  %s5 = inlined_call_operand.vmem [shape: bf16[32,128], index: 5, kind: input, shape index: {}]
  %s6 = inlined_call_operand.vmem [shape: bf16[32,128], index: 6, kind: input, shape index: {}]
  %s7 = inlined_call_operand.hbm [shape: f32[1,128], index: 7, kind: input, shape index: {}]
  %s8 = inlined_call_operand.vmem [shape: bf16[64,128], index: 8, kind: input, shape index: {}]
  %s9 = inlined_call_operand.hbm [shape: f32[1,128], index: 9, kind: input, shape index: {}]
  %s10 = inlined_call_operand.vmem [shape: bf16[32,32], index: 10, kind: input, shape index: {}]
  %s11 = inlined_call_operand.vmem [shape: f32[1,32], index: 11, kind: input, shape index: {}]
  %s12 = inlined_call_operand.vmem [shape: bf16[32,128], index: 12, kind: input, shape index: {}]
  %s13 = inlined_call_operand.vmem [shape: f32[1,128], index: 13, kind: input, shape index: {}]
  %s14 = inlined_call_operand.hbm [shape: f32[1,64,128], index: 14, kind: output, shape index: {}]
  %s15 = sld [smem:[#allocation0]]
  $region78: #{tpu_custom_call.1} parent=0
    _
  %s17 = ssub.s32 1, %s15
  %s18 = scalar_select 0, %s17, %s15
  $region1: #{tpu_custom_call.1} parent=0
    #allocation2 [shape = 'u8[4096]{0}', space=vmem, size = 0x1000, scoped, tag = 'input window, operand 1, single buffered']
    #allocation3 [shape = 's32[1]{0}', space=sflag, size = 0x4, scoped, tag = 'scoped memory for tpu_custom_call.1']
    #allocation4 [shape = 's32[1]{0}', space=sflag, size = 0x4, scoped, tag = 'scoped memory for tpu_custom_call.1']
    #allocation5 [shape = 'u8[512]{0}', space=vmem, size = 0x400, scoped, tag = 'input window, operand 7, single buffered']
    #allocation6 [shape = 's32[1]{0}', space=sflag, size = 0x4, scoped, tag = 'scoped memory for tpu_custom_call.1']
    #allocation7 [shape = 'u8[512]{0}', space=vmem, size = 0x400, scoped, tag = 'input window, operand 9, single buffered']
    #allocation8 [shape = 'u8[32768]{0}', space=vmem, size = 0x8000, scoped, tag = 'output window, operand 0, single buffered']
    %19 = vsyncpa [#allocation3], 0
    %20 = vsyncpa [#allocation6], 0
    %21 = vsyncpa [#allocation4], 0
    // Predicated region
    $region2: #{tpu_custom_call.1} parent=1 // pred_check
      _
    $region3: #{tpu_custom_call.1} parent=1 // pred_check_branch
      %23 = sbr.rel (0) target = $region5
    $region4: #{tpu_custom_call.1} parent=1 // pred_region
      _
    $region5: #{tpu_custom_call.1} parent=1 // pred_fallthru
      _
    // Predicated region
    $region6: #{tpu_custom_call.1} parent=1 // pred_check
      _
    $region7: #{tpu_custom_call.1} parent=1 // pred_check_branch
      %25 = sbr.rel (0) target = $region9
    $region8: #{tpu_custom_call.1} parent=1 // pred_region
      %s27 = ssub.s32 128, 128
      %28 = vsyncadd [#allocation3], %s27
      %s29 = sshll.u32 [#allocation2], 4
      %s30 = int_to_ptr.vmem [resolvable:$true] %s29
      %35 = dma.hbm_to_vmem [thread:$0]  %s1, 128, %s30, [#allocation3], 64, 64, 4
    $region9: #{tpu_custom_call.1} parent=1 // pred_fallthru
      _
    // Predicated region
    $region10: #{tpu_custom_call.1} parent=1 // pred_check
      _
    $region11: #{tpu_custom_call.1} parent=1 // pred_check_branch
      %37 = sbr.rel (0) target = $region13
    $region12: #{tpu_custom_call.1} parent=1 // pred_region
      _
    $region13: #{tpu_custom_call.1} parent=1 // pred_fallthru
      _
    // Predicated region
    $region14: #{tpu_custom_call.1} parent=1 // pred_check
      _
    $region15: #{tpu_custom_call.1} parent=1 // pred_check_branch
      %39 = sbr.rel (0) target = $region17
    $region16: #{tpu_custom_call.1} parent=1 // pred_region
      _
    $region17: #{tpu_custom_call.1} parent=1 // pred_fallthru
      _
    // Predicated region
    $region18: #{tpu_custom_call.1} parent=1 // pred_check
      _
    $region19: #{tpu_custom_call.1} parent=1 // pred_check_branch
      %41 = sbr.rel (0) target = $region21
    $region20: #{tpu_custom_call.1} parent=1 // pred_region
      _
    $region21: #{tpu_custom_call.1} parent=1 // pred_fallthru
      _
    // Predicated region
    $region22: #{tpu_custom_call.1} parent=1 // pred_check
      _
    $region23: #{tpu_custom_call.1} parent=1 // pred_check_branch
      %43 = sbr.rel (0) target = $region25
    $region24: #{tpu_custom_call.1} parent=1 // pred_region
      _
    $region25: #{tpu_custom_call.1} parent=1 // pred_fallthru
      _
    // Predicated region
    $region26: #{tpu_custom_call.1} parent=1 // pred_check
      _
    $region27: #{tpu_custom_call.1} parent=1 // pred_check_branch
      %45 = sbr.rel (0) target = $region29
    $region28: #{tpu_custom_call.1} parent=1 // pred_region
      _
    $region29: #{tpu_custom_call.1} parent=1 // pred_fallthru
      _
    // Predicated region
    $region30: #{tpu_custom_call.1} parent=1 // pred_check
      _
    $region31: #{tpu_custom_call.1} parent=1 // pred_check_branch
      %47 = sbr.rel (0) target = $region33
    $region32: #{tpu_custom_call.1} parent=1 // pred_region
      %s49 = ssub.s32 16, 16
      %50 = vsyncadd [#allocation6], %s49
      %s52 = sshll.u32 [#allocation5], 4
      %s53 = int_to_ptr.vmem [resolvable:$true] %s52
      %55 = dma.hbm_to_vmem [thread:$0]  %s7, 16, %s53, [#allocation6]
    $region33: #{tpu_custom_call.1} parent=1 // pred_fallthru
      _
    // Predicated region
    $region34: #{tpu_custom_call.1} parent=1 // pred_check
      _
    $region35: #{tpu_custom_call.1} parent=1 // pred_check_branch
      %57 = sbr.rel (0) target = $region37
    $region36: #{tpu_custom_call.1} parent=1 // pred_region
      _
    $region37: #{tpu_custom_call.1} parent=1 // pred_fallthru
      _
    // Predicated region
    $region38: #{tpu_custom_call.1} parent=1 // pred_check
      _
    $region39: #{tpu_custom_call.1} parent=1 // pred_check_branch
      %59 = sbr.rel (0) target = $region41
    $region40: #{tpu_custom_call.1} parent=1 // pred_region
      %s61 = ssub.s32 16, 16
      %62 = vsyncadd [#allocation6], %s61
      %s64 = sshll.u32 [#allocation7], 4
      %s65 = int_to_ptr.vmem [resolvable:$true] %s64
      %67 = dma.hbm_to_vmem [thread:$0]  %s9, 16, %s65, [#allocation6]
    $region41: #{tpu_custom_call.1} parent=1 // pred_fallthru
      _
    // Predicated region
    $region42: #{tpu_custom_call.1} parent=1 // pred_check
      _
    $region43: #{tpu_custom_call.1} parent=1 // pred_check_branch
      %69 = sbr.rel (0) target = $region45
    $region44: #{tpu_custom_call.1} parent=1 // pred_region
      _
    $region45: #{tpu_custom_call.1} parent=1 // pred_fallthru
      _
    // Predicated region
    $region46: #{tpu_custom_call.1} parent=1 // pred_check
      _
    $region47: #{tpu_custom_call.1} parent=1 // pred_check_branch
      %71 = sbr.rel (0) target = $region49
    $region48: #{tpu_custom_call.1} parent=1 // pred_region
      _
    $region49: #{tpu_custom_call.1} parent=1 // pred_fallthru
      _
    // Predicated region
    $region50: #{tpu_custom_call.1} parent=1 // pred_check
      _
    $region51: #{tpu_custom_call.1} parent=1 // pred_check_branch
      %73 = sbr.rel (0) target = $region53
    $region52: #{tpu_custom_call.1} parent=1 // pred_region
      _
    $region53: #{tpu_custom_call.1} parent=1 // pred_fallthru
      _
    // Predicated region
    $region54: #{tpu_custom_call.1} parent=1 // pred_check
      _
    $region55: #{tpu_custom_call.1} parent=1 // pred_check_branch
      %75 = sbr.rel (0) target = $region57
    $region56: #{tpu_custom_call.1} parent=1 // pred_region
      _
    $region57: #{tpu_custom_call.1} parent=1 // pred_fallthru
      _
    // Predicated region
    $region58: #{tpu_custom_call.1} parent=1 // pred_check
      _
    $region59: #{tpu_custom_call.1} parent=1 // pred_check_branch
      %77 = sbr.rel (0) target = $region61
    $region60: #{tpu_custom_call.1} parent=1 // pred_region
      %78 = dma.done [#allocation3], 128
    $region61: #{tpu_custom_call.1} parent=1 // pred_fallthru
      _
    // Predicated region
    $region62: #{tpu_custom_call.1} parent=1 // pred_check
      _
    $region63: #{tpu_custom_call.1} parent=1 // pred_check_branch
      %80 = sbr.rel (0) target = $region65
    $region64: #{tpu_custom_call.1} parent=1 // pred_region
      %81 = dma.done [#allocation6], 16
    $region65: #{tpu_custom_call.1} parent=1 // pred_fallthru
      _
    // Predicated region
    $region66: #{tpu_custom_call.1} parent=1 // pred_check
      _
    $region67: #{tpu_custom_call.1} parent=1 // pred_check_branch
      %83 = sbr.rel (0) target = $region69
    $region68: #{tpu_custom_call.1} parent=1 // pred_region
      %84 = dma.done [#allocation6], 16
    $region69: #{tpu_custom_call.1} parent=1 // pred_fallthru
      _
    %v86 = vld [vmem:[%s0] sm:$0xff]
    %v87 = vld [vmem:[%s0 + $0x8] sm:$0xff]
    %v88 = vld [vmem:[%s0 + $0x10] sm:$0xff]
    %v89 = vld [vmem:[%s0 + $0x18] sm:$0xff]
    %v90 = vld [vmem:[%s0 + $0x20] sm:$0xff]
    %v91 = vld [vmem:[%s0 + $0x28] sm:$0xff]
    %v92 = vld [vmem:[%s0 + $0x30] sm:$0xff]
    %v93 = vld [vmem:[%s0 + $0x38] sm:$0xff]
    %v94 = vpack.c.bf16 %v87, %v86
    %v95 = vpack.c.bf16 %v89, %v88
    %v96 = vpack.c.bf16 %v91, %v90
    %v97 = vpack.c.bf16 %v93, %v92
    %v98 = vld [vmem:[#allocation2] sm:$0xf]
    %v99 = vld [vmem:[#allocation2 + $0x4] sm:$0xf]
    %v100 = vld [vmem:[%s2] sm:$0x1]
    %v102 = vlaneseq
    %v103 = vshrl.u32 %v102, 7
    %v104 = vsub.s32 0, %v103
    %v105 = vrot.slane %v100, %v104
    %v109 = vunpack.c.l.b16 %v98
    %v110 = vunpack.c.l.b16 %v99
    %v111 = vpack.c.b16 %v110, %v109
    %vm113 = vcmask 130048
    %v115 = vsel %vm113, %v94, 0
    %v118 = vsel %vm113, %v95, 0
    %v121 = vsel %vm113, %v96, 0
    %v124 = vsel %vm113, %v97, 0
    %126 = vmatprep.subr.bf16.mxu0 0
    %127 = vmatpush1.bf16.msra.mxu0 %v111
    %128 = vmatprep.subr.bf16.mxu0 0
    %129 = vmatpush1.bf16.msra.mxu0 0
    %130 = vmatprep.subr.bf16.mxu0 0
    %131 = vmatpush1.bf16.msra.mxu0 0
    %132 = vmatprep.subr.bf16.mxu0 0
    %133 = vmatpush1.bf16.msra.mxu0 0
    %134 = vmatprep.subr.bf16.mxu0 0
    %135 = vmatpush1.bf16.msra.mxu0 0
    %136 = vmatprep.subr.bf16.mxu0 0
    %137 = vmatpush1.bf16.msra.mxu0 0
    %138 = vmatprep.subr.bf16.mxu0 0
    %139 = vmatpush1.bf16.msra.mxu0 0
    %140 = vmatprep.subr.bf16.mxu0 0
    %141 = vmatpush1.bf16.msra.mxu0 0
    %142 = vmatprep.subr.bf16.mxu0 0
    %143 = vmatpush1.bf16.msra.mxu0 0
    %144 = vmatprep.subr.bf16.mxu0 0
    %145 = vmatpush1.bf16.msra.mxu0 0
    %146 = vmatprep.subr.bf16.mxu0 0
    %147 = vmatpush1.bf16.msra.mxu0 0
    %148 = vmatprep.subr.bf16.mxu0 0
    %149 = vmatpush1.bf16.msra.mxu0 0
    %150 = vmatprep.subr.bf16.mxu0 0
    %151 = vmatpush1.bf16.msra.mxu0 0
    %152 = vmatprep.subr.bf16.mxu0 0
    %153 = vmatpush1.bf16.msra.mxu0 0
    %154 = vmatprep.subr.bf16.mxu0 0
    %155 = vmatpush1.bf16.msra.mxu0 0
    %156 = vmatprep.subr.bf16.mxu0 0
    %157 = vmatpush1.bf16.msra.mxu0 0
    %158 = vmatprep.mubr.bf16.mxu0 0
    %159 = vmatmul.mubr.bf16.gmra.mrb[0].mxu0 %v115
    %v160 = vpop.f32.mrb[0].mxu0
    %v161 = vadd.f32 %v105, %v160
    %v162 = vpop.f32.mrb[0].mxu0
    %v163 = vpop.f32.mrb[0].mxu0
    %v164 = vadd.f32 %v105, %v163
    %v165 = vpop.f32.mrb[0].mxu0
    %166 = vmatprep.mubr.bf16.mxu0 0
    %167 = vmatmul.mubr.bf16.gmra.mrb[0].mxu0 %v118
    %v168 = vpop.f32.mrb[0].mxu0
    %v169 = vadd.f32 %v105, %v168
    %v170 = vpop.f32.mrb[0].mxu0
    %v171 = vpop.f32.mrb[0].mxu0
    %v172 = vadd.f32 %v105, %v171
    %v173 = vpop.f32.mrb[0].mxu0
    %174 = vmatprep.mubr.bf16.mxu0 0
    %175 = vmatmul.mubr.bf16.gmra.mrb[0].mxu0 %v121
    %v176 = vpop.f32.mrb[0].mxu0
    %v177 = vadd.f32 %v105, %v176
    %v178 = vpop.f32.mrb[0].mxu0
    %v179 = vpop.f32.mrb[0].mxu0
    %v180 = vadd.f32 %v105, %v179
    %v181 = vpop.f32.mrb[0].mxu0
    %182 = vmatprep.mubr.bf16.mxu0 0
    %183 = vmatmul.mubr.bf16.gmra.mrb[0].mxu0 %v124
    %v184 = vpop.f32.mrb[0].mxu0
    %v185 = vadd.f32 %v105, %v184
    %v186 = vpop.f32.mrb[0].mxu0
    %v187 = vpop.f32.mrb[0].mxu0
    %v188 = vadd.f32 %v105, %v187
    %v189 = vpop.f32.mrb[0].mxu0
    %190 = vdwg.mxu0
    %v191 = vmax.f32 %v161, 0.0
    %v192 = vmax.f32 %v164, 0.0
    %v193 = vmax.f32 %v169, 0.0
    %v194 = vmax.f32 %v172, 0.0
    %v195 = vmax.f32 %v177, 0.0
    %v196 = vmax.f32 %v180, 0.0
    %v197 = vmax.f32 %v185, 0.0
    %v198 = vmax.f32 %v188, 0.0
    %v199 = vpack.c.bf16 %v192, %v191
    %v200 = vpack.c.bf16 %v194, %v193
    %v201 = vpack.c.bf16 %v196, %v195
    %v202 = vpack.c.bf16 %v198, %v197
    %v203 = vld [vmem:[%s3] sm:$0xf]
    %v204 = vld [vmem:[%s3 + $0x4] sm:$0xf]
    %v205 = vld [vmem:[%s3 + $0x8] sm:$0xf]
    %v206 = vld [vmem:[%s3 + $0xc] sm:$0xf]
    %v207 = vld [vmem:[%s4] sm:$0x1]
    %v209 = vlaneseq
    %v210 = vshrl.u32 %v209, 7
    %v211 = vsub.s32 0, %v210
    %v212 = vrot.slane %v207, %v211
    %v218 = vunpack.c.l.b16 %v203
    %v219 = vunpack.c.l.b16 %v204
    %v220 = vunpack.c.l.b16 %v205
    %v221 = vunpack.c.l.b16 %v206
    %v222 = vpack.c.b16 %v219, %v218
    %v223 = vpack.c.b16 %v221, %v220
    %vm226 = vcmask 261120
    %v228 = vsel %vm226, %v199, 0
    %v231 = vsel %vm226, %v200, 0
    %v234 = vsel %vm226, %v201, 0
    %v237 = vsel %vm226, %v202, 0
    %239 = vmatprep.subr.bf16.mxu0 0
    %240 = vmatpush1.bf16.msra.mxu0 %v222
    %241 = vmatprep.subr.bf16.mxu0 0
    %242 = vmatpush1.bf16.msra.mxu0 %v223
    %243 = vmatprep.subr.bf16.mxu0 0
    %244 = vmatpush1.bf16.msra.mxu0 0
    %245 = vmatprep.subr.bf16.mxu0 0
    %246 = vmatpush1.bf16.msra.mxu0 0
    %247 = vmatprep.subr.bf16.mxu0 0
    %248 = vmatpush1.bf16.msra.mxu0 0
    %249 = vmatprep.subr.bf16.mxu0 0
    %250 = vmatpush1.bf16.msra.mxu0 0
    %251 = vmatprep.subr.bf16.mxu0 0
    %252 = vmatpush1.bf16.msra.mxu0 0
    %253 = vmatprep.subr.bf16.mxu0 0
    %254 = vmatpush1.bf16.msra.mxu0 0
    %255 = vmatprep.subr.bf16.mxu0 0
    %256 = vmatpush1.bf16.msra.mxu0 0
    %257 = vmatprep.subr.bf16.mxu0 0
    %258 = vmatpush1.bf16.msra.mxu0 0
    %259 = vmatprep.subr.bf16.mxu0 0
    %260 = vmatpush1.bf16.msra.mxu0 0
    %261 = vmatprep.subr.bf16.mxu0 0
    %262 = vmatpush1.bf16.msra.mxu0 0
    %263 = vmatprep.subr.bf16.mxu0 0
    %264 = vmatpush1.bf16.msra.mxu0 0
    %265 = vmatprep.subr.bf16.mxu0 0
    %266 = vmatpush1.bf16.msra.mxu0 0
    %267 = vmatprep.subr.bf16.mxu0 0
    %268 = vmatpush1.bf16.msra.mxu0 0
    %269 = vmatprep.subr.bf16.mxu0 0
    %270 = vmatpush1.bf16.msra.mxu0 0
    %271 = vmatprep.mubr.bf16.mxu0 0
    %272 = vmatmul.mubr.bf16.gmra.mrb[0].mxu0 %v228
    %v273 = vpop.f32.mrb[0].mxu0
    %v274 = vadd.f32 %v212, %v273
    %v275 = vpop.f32.mrb[0].mxu0
    %v276 = vpop.f32.mrb[0].mxu0
    %v277 = vadd.f32 %v212, %v276
    %v278 = vpop.f32.mrb[0].mxu0
    %279 = vmatprep.mubr.bf16.mxu0 0
    %280 = vmatmul.mubr.bf16.gmra.mrb[0].mxu0 %v231
    %v281 = vpop.f32.mrb[0].mxu0
    %v282 = vadd.f32 %v212, %v281
    %v283 = vpop.f32.mrb[0].mxu0
    %v284 = vpop.f32.mrb[0].mxu0
    %v285 = vadd.f32 %v212, %v284
    %v286 = vpop.f32.mrb[0].mxu0
    %287 = vmatprep.mubr.bf16.mxu0 0
    %288 = vmatmul.mubr.bf16.gmra.mrb[0].mxu0 %v234
    %v289 = vpop.f32.mrb[0].mxu0
    %v290 = vadd.f32 %v212, %v289
    %v291 = vpop.f32.mrb[0].mxu0
    %v292 = vpop.f32.mrb[0].mxu0
    %v293 = vadd.f32 %v212, %v292
    %v294 = vpop.f32.mrb[0].mxu0
    %295 = vmatprep.mubr.bf16.mxu0 0
    %296 = vmatmul.mubr.bf16.gmra.mrb[0].mxu0 %v237
    %v297 = vpop.f32.mrb[0].mxu0
    %v298 = vadd.f32 %v212, %v297
    %v299 = vpop.f32.mrb[0].mxu0
    %v300 = vpop.f32.mrb[0].mxu0
    %v301 = vadd.f32 %v212, %v300
    %v302 = vpop.f32.mrb[0].mxu0
    %303 = vdwg.mxu0
    %v304 = vlaneseq
    %v305 = vand.u32 %v304, 127
    %vm306 = vcmp.ge.s32.totalorder %v305, 64
    %vm307 = vcmp.lt.s32.totalorder %v305, 96
    %vm308 = vmand %vm306, %vm307
    %v309 = vsel %vm308, 1.0, 0.5
    %v310 = vpack.c.bf16 %v277, %v274
    %v311 = vpack.c.bf16 %v285, %v282
    %v312 = vpack.c.bf16 %v293, %v290
    %v313 = vpack.c.bf16 %v301, %v298
    %v314 = vld [vmem:[%s5] sm:$0xf]
    %v315 = vld [vmem:[%s5 + $0x4] sm:$0xf]
    %v316 = vld [vmem:[%s5 + $0x8] sm:$0xf]
    %v317 = vld [vmem:[%s5 + $0xc] sm:$0xf]
    %v318 = vld [vmem:[#allocation5] sm:$0x1]
    %v320 = vlaneseq
    %v321 = vshrl.u32 %v320, 7
    %v322 = vsub.s32 0, %v321
    %v323 = vrot.slane %v318, %v322
    %v329 = vunpack.c.l.b16 %v314
    %v330 = vunpack.c.l.b16 %v315
    %v331 = vunpack.c.l.b16 %v316
    %v332 = vunpack.c.l.b16 %v317
    %v333 = vpack.c.b16 %v330, %v329
    %v334 = vpack.c.b16 %v332, %v331
    %v338 = vsel %vm226, %v310, 0
    %v341 = vsel %vm226, %v311, 0
    %v344 = vsel %vm226, %v312, 0
    %v347 = vsel %vm226, %v313, 0
    %349 = vmatprep.subr.bf16.mxu0 0
    %350 = vmatpush1.bf16.msra.mxu0 %v333
    %351 = vmatprep.subr.bf16.mxu0 0
    %352 = vmatpush1.bf16.msra.mxu0 %v334
    %353 = vmatprep.subr.bf16.mxu0 0
    %354 = vmatpush1.bf16.msra.mxu0 0
    %355 = vmatprep.subr.bf16.mxu0 0
    %356 = vmatpush1.bf16.msra.mxu0 0
    %357 = vmatprep.subr.bf16.mxu0 0
    %358 = vmatpush1.bf16.msra.mxu0 0
    %359 = vmatprep.subr.bf16.mxu0 0
    %360 = vmatpush1.bf16.msra.mxu0 0
    %361 = vmatprep.subr.bf16.mxu0 0
    %362 = vmatpush1.bf16.msra.mxu0 0
    %363 = vmatprep.subr.bf16.mxu0 0
    %364 = vmatpush1.bf16.msra.mxu0 0
    %365 = vmatprep.subr.bf16.mxu0 0
    %366 = vmatpush1.bf16.msra.mxu0 0
    %367 = vmatprep.subr.bf16.mxu0 0
    %368 = vmatpush1.bf16.msra.mxu0 0
    %369 = vmatprep.subr.bf16.mxu0 0
    %370 = vmatpush1.bf16.msra.mxu0 0
    %371 = vmatprep.subr.bf16.mxu0 0
    %372 = vmatpush1.bf16.msra.mxu0 0
    %373 = vmatprep.subr.bf16.mxu0 0
    %374 = vmatpush1.bf16.msra.mxu0 0
    %375 = vmatprep.subr.bf16.mxu0 0
    %376 = vmatpush1.bf16.msra.mxu0 0
    %377 = vmatprep.subr.bf16.mxu0 0
    %378 = vmatpush1.bf16.msra.mxu0 0
    %379 = vmatprep.subr.bf16.mxu0 0
    %380 = vmatpush1.bf16.msra.mxu0 0
    %381 = vmatprep.mubr.bf16.mxu0 0
    %382 = vmatmul.mubr.bf16.gmra.mrb[0].mxu0 %v338
    %v383 = vpop.f32.mrb[0].mxu0
    %v384 = vadd.f32 %v323, %v383
    %v385 = vpop.f32.mrb[0].mxu0
    %v386 = vpop.f32.mrb[0].mxu0
    %v387 = vadd.f32 %v323, %v386
    %v388 = vpop.f32.mrb[0].mxu0
    %389 = vmatprep.mubr.bf16.mxu0 0
    %390 = vmatmul.mubr.bf16.gmra.mrb[0].mxu0 %v341
    %v391 = vpop.f32.mrb[0].mxu0
    %v392 = vadd.f32 %v323, %v391
    %v393 = vpop.f32.mrb[0].mxu0
    %v394 = vpop.f32.mrb[0].mxu0
    %v395 = vadd.f32 %v323, %v394
    %v396 = vpop.f32.mrb[0].mxu0
    %397 = vmatprep.mubr.bf16.mxu0 0
    %398 = vmatmul.mubr.bf16.gmra.mrb[0].mxu0 %v344
    %v399 = vpop.f32.mrb[0].mxu0
    %v400 = vadd.f32 %v323, %v399
    %v401 = vpop.f32.mrb[0].mxu0
    %v402 = vpop.f32.mrb[0].mxu0
    %v403 = vadd.f32 %v323, %v402
    %v404 = vpop.f32.mrb[0].mxu0
    %405 = vmatprep.mubr.bf16.mxu0 0
    %406 = vmatmul.mubr.bf16.gmra.mrb[0].mxu0 %v347
    %v407 = vpop.f32.mrb[0].mxu0
    %v408 = vadd.f32 %v323, %v407
    %v409 = vpop.f32.mrb[0].mxu0
    %v410 = vpop.f32.mrb[0].mxu0
    %v411 = vadd.f32 %v323, %v410
    %v412 = vpop.f32.mrb[0].mxu0
    %413 = vdwg.mxu0
    %v414 = vld [vmem:[%s6] sm:$0xf]
    %v415 = vld [vmem:[%s6 + $0x4] sm:$0xf]
    %v416 = vld [vmem:[%s6 + $0x8] sm:$0xf]
    %v417 = vld [vmem:[%s6 + $0xc] sm:$0xf]
    %v418 = vld [vmem:[%s8] sm:$0xf]
    %v419 = vld [vmem:[%s8 + $0x4] sm:$0xf]
    %v420 = vld [vmem:[%s8 + $0x8] sm:$0xf]
    %v421 = vld [vmem:[%s8 + $0xc] sm:$0xf]
    %v422 = vld [vmem:[%s8 + $0x10] sm:$0xf]
    %v423 = vld [vmem:[%s8 + $0x14] sm:$0xf]
    %v424 = vld [vmem:[%s8 + $0x18] sm:$0xf]
    %v425 = vld [vmem:[%s8 + $0x1c] sm:$0xf]
    %v426 = vld [vmem:[#allocation7] sm:$0x1]
    %v431 = vunpack.c.l.b16 %v414
    %v432 = vunpack.c.l.b16 %v415
    %v433 = vunpack.c.l.b16 %v416
    %v434 = vunpack.c.l.b16 %v417
    %v435 = vpack.c.b16 %v432, %v431
    %v436 = vpack.c.b16 %v434, %v433
    %v440 = vsel %vm226, 0, 0
    %442 = vmatprep.subr.bf16.mxu0 0
    %443 = vmatpush1.bf16.msra.mxu0 %v435
    %444 = vmatprep.subr.bf16.mxu0 0
    %445 = vmatpush1.bf16.msra.mxu0 %v436
    %446 = vmatprep.subr.bf16.mxu0 0
    %447 = vmatpush1.bf16.msra.mxu0 0
    %448 = vmatprep.subr.bf16.mxu0 0
    %449 = vmatpush1.bf16.msra.mxu0 0
    %450 = vmatprep.subr.bf16.mxu0 0
    %451 = vmatpush1.bf16.msra.mxu0 0
    %452 = vmatprep.subr.bf16.mxu0 0
    %453 = vmatpush1.bf16.msra.mxu0 0
    %454 = vmatprep.subr.bf16.mxu0 0
    %455 = vmatpush1.bf16.msra.mxu0 0
    %456 = vmatprep.subr.bf16.mxu0 0
    %457 = vmatpush1.bf16.msra.mxu0 0
    %458 = vmatprep.subr.bf16.mxu0 0
    %459 = vmatpush1.bf16.msra.mxu0 0
    %460 = vmatprep.subr.bf16.mxu0 0
    %461 = vmatpush1.bf16.msra.mxu0 0
    %462 = vmatprep.subr.bf16.mxu0 0
    %463 = vmatpush1.bf16.msra.mxu0 0
    %464 = vmatprep.subr.bf16.mxu0 0
    %465 = vmatpush1.bf16.msra.mxu0 0
    %466 = vmatprep.subr.bf16.mxu0 0
    %467 = vmatpush1.bf16.msra.mxu0 0
    %468 = vmatprep.subr.bf16.mxu0 0
    %469 = vmatpush1.bf16.msra.mxu0 0
    %470 = vmatprep.subr.bf16.mxu0 0
    %471 = vmatpush1.bf16.msra.mxu0 0
    %472 = vmatprep.subr.bf16.mxu0 0
    %473 = vmatpush1.bf16.msra.mxu0 0
    %474 = vmatprep.mubr.bf16.mxu0 0
    %475 = vmatmul.mubr.bf16.gmra.mrb[0].mxu0 %v440
    %v476 = vpop.f32.mrb[0].mxu0
    %v477 = vadd.f32 0.0, %v476
    %v478 = vpop.f32.mrb[0].mxu0
    %v479 = vpop.f32.mrb[0].mxu0
    %v480 = vpop.f32.mrb[0].mxu0
    %481 = vdwg.mxu0
    %v482 = vadd.f32 %v384, %v477
    %v483 = vmul.f32 %v482, %v309
    %v484 = vtanh.pop %v483
    %v485 = vadd.f32 %v484, 1.0
    %v486 = vmul.f32 %v485, 0.5
    %v487 = vsel %vm308, %v484, %v486
    %v488 = vmul.f32 %v487, 0.0
    %490 = vrot.lane.b32.xlu0 %v487, 64
    %v491 = vpop.permute.xlu0 %490
    %v493 = vmul.f32 %v487, %v491
    %495 = vrot.lane.b32.xlu0 %v493, 32
    %v496 = vpop.permute.xlu0 %495
    %v498 = vadd.f32 %v488, %v496
    %v499 = vtanh.pop %v498
    %501 = vrot.lane.b32.xlu0 %v499, 64
    %v502 = vpop.permute.xlu0 %501
    %v504 = vmul.f32 %v487, %v502
    %v505 = vpack.c.bf16 %v504, %v504
    %507 = vrot.lane.b32.xlu0 %v505, 32
    %v508 = vpop.permute.xlu0 %507
    %v510 = vsel %vm226, %v508, 0
    %512 = vmatprep.subr.bf16.mxu0 0
    %513 = vmatpush1.bf16.msra.mxu0 %v435
    %514 = vmatprep.subr.bf16.mxu0 0
    %515 = vmatpush1.bf16.msra.mxu0 %v436
    %516 = vmatprep.subr.bf16.mxu0 0
    %517 = vmatpush1.bf16.msra.mxu0 0
    %518 = vmatprep.subr.bf16.mxu0 0
    %519 = vmatpush1.bf16.msra.mxu0 0
    %520 = vmatprep.subr.bf16.mxu0 0
    %521 = vmatpush1.bf16.msra.mxu0 0
    %522 = vmatprep.subr.bf16.mxu0 0
    %523 = vmatpush1.bf16.msra.mxu0 0
    %524 = vmatprep.subr.bf16.mxu0 0
    %525 = vmatpush1.bf16.msra.mxu0 0
    %526 = vmatprep.subr.bf16.mxu0 0
    %527 = vmatpush1.bf16.msra.mxu0 0
    %528 = vmatprep.subr.bf16.mxu0 0
    %529 = vmatpush1.bf16.msra.mxu0 0
    %530 = vmatprep.subr.bf16.mxu0 0
    %531 = vmatpush1.bf16.msra.mxu0 0
    %532 = vmatprep.subr.bf16.mxu0 0
    %533 = vmatpush1.bf16.msra.mxu0 0
    %534 = vmatprep.subr.bf16.mxu0 0
    %535 = vmatpush1.bf16.msra.mxu0 0
    %536 = vmatprep.subr.bf16.mxu0 0
    %537 = vmatpush1.bf16.msra.mxu0 0
    %538 = vmatprep.subr.bf16.mxu0 0
    %539 = vmatpush1.bf16.msra.mxu0 0
    %540 = vmatprep.subr.bf16.mxu0 0
    %541 = vmatpush1.bf16.msra.mxu0 0
    %542 = vmatprep.subr.bf16.mxu0 0
    %543 = vmatpush1.bf16.msra.mxu0 0
    %544 = vmatprep.mubr.bf16.mxu0 0
    %545 = vmatmul.mubr.bf16.gmra.mrb[0].mxu0 %v510
    %v546 = vpop.f32.mrb[0].mxu0
    %v547 = vadd.f32 0.0, %v546
    %v548 = vpop.f32.mrb[0].mxu0
    %v549 = vpop.f32.mrb[0].mxu0
    %v550 = vpop.f32.mrb[0].mxu0
    %551 = vdwg.mxu0
    %v552 = vadd.f32 %v387, %v547
    %v553 = vmul.f32 %v552, %v309
    %v554 = vtanh.pop %v553
    %v555 = vadd.f32 %v554, 1.0
    %v556 = vmul.f32 %v555, 0.5
    %v557 = vsel %vm308, %v554, %v556
    %v558 = vmul.f32 %v557, %v498
    %560 = vrot.lane.b32.xlu0 %v557, 64
    %v561 = vpop.permute.xlu0 %560
    %v563 = vmul.f32 %v557, %v561
    %565 = vrot.lane.b32.xlu0 %v563, 32
    %v566 = vpop.permute.xlu0 %565
    %v568 = vadd.f32 %v558, %v566
    %v569 = vtanh.pop %v568
    %571 = vrot.lane.b32.xlu0 %v569, 64
    %v572 = vpop.permute.xlu0 %571
    %v574 = vmul.f32 %v557, %v572
    %v575 = vsel %vm226, %v508, 0
    %v577 = vlaneseq
    %v578 = vshrl.u32 %v577, 7
    %v579 = vsub.s32 0, %v578
    %v580 = vrot.slane %v426, %v579
    %v590 = vunpack.c.l.b16 %v418
    %v591 = vunpack.c.l.b16 %v419
    %v592 = vunpack.c.l.b16 %v420
    %v593 = vunpack.c.l.b16 %v421
    %v594 = vunpack.c.l.b16 %v422
    %v595 = vunpack.c.l.b16 %v423
    %v596 = vunpack.c.l.b16 %v424
    %v597 = vunpack.c.l.b16 %v425
    %v598 = vpack.c.b16 %v591, %v590
    %v599 = vpack.c.b16 %v593, %v592
    %v600 = vpack.c.b16 %v595, %v594
    %v601 = vpack.c.b16 %v597, %v596
    %vm606 = vcmask 523264
    %v607 = vsel %vm606, %v575, 0
    %609 = vmatprep.subr.bf16.mxu0 0
    %610 = vmatpush1.bf16.msra.mxu0 %v598
    %611 = vmatprep.subr.bf16.mxu0 0
    %612 = vmatpush1.bf16.msra.mxu0 %v599
    %613 = vmatprep.subr.bf16.mxu0 0
    %614 = vmatpush1.bf16.msra.mxu0 %v600
    %615 = vmatprep.subr.bf16.mxu0 0
    %616 = vmatpush1.bf16.msra.mxu0 %v601
    %617 = vmatprep.subr.bf16.mxu0 0
    %618 = vmatpush1.bf16.msra.mxu0 0
    %619 = vmatprep.subr.bf16.mxu0 0
    %620 = vmatpush1.bf16.msra.mxu0 0
    %621 = vmatprep.subr.bf16.mxu0 0
    %622 = vmatpush1.bf16.msra.mxu0 0
    %623 = vmatprep.subr.bf16.mxu0 0
    %624 = vmatpush1.bf16.msra.mxu0 0
    %625 = vmatprep.subr.bf16.mxu0 0
    %626 = vmatpush1.bf16.msra.mxu0 0
    %627 = vmatprep.subr.bf16.mxu0 0
    %628 = vmatpush1.bf16.msra.mxu0 0
    %629 = vmatprep.subr.bf16.mxu0 0
    %630 = vmatpush1.bf16.msra.mxu0 0
    %631 = vmatprep.subr.bf16.mxu0 0
    %632 = vmatpush1.bf16.msra.mxu0 0
    %633 = vmatprep.subr.bf16.mxu0 0
    %634 = vmatpush1.bf16.msra.mxu0 0
    %635 = vmatprep.subr.bf16.mxu0 0
    %636 = vmatpush1.bf16.msra.mxu0 0
    %637 = vmatprep.subr.bf16.mxu0 0
    %638 = vmatpush1.bf16.msra.mxu0 0
    %639 = vmatprep.subr.bf16.mxu0 0
    %640 = vmatpush1.bf16.msra.mxu0 0
    %641 = vmatprep.mubr.bf16.mxu0 0
    %642 = vmatmul.mubr.bf16.gmra.mrb[0].mxu0 %v607
    %v643 = vpop.f32.mrb[0].mxu0
    %v644 = vadd.f32 %v580, %v643
    %v645 = vpop.f32.mrb[0].mxu0
    %v646 = vpop.f32.mrb[0].mxu0
    %v647 = vpop.f32.mrb[0].mxu0
    %648 = vdwg.mxu0
    %v649 = vmul.f32 %v644, %v309
    %v650 = vtanh.pop %v649
    %v651 = vadd.f32 %v650, 1.0
    %v652 = vmul.f32 %v651, 0.5
    %v653 = vsel %vm308, %v650, %v652
    %v654 = vmul.f32 %v653, 0.0
    %656 = vrot.lane.b32.xlu0 %v653, 64
    %v657 = vpop.permute.xlu0 %656
    %v659 = vmul.f32 %v653, %v657
    %661 = vrot.lane.b32.xlu0 %v659, 32
    %v662 = vpop.permute.xlu0 %661
    %v664 = vadd.f32 %v654, %v662
    %v665 = vtanh.pop %v664
    %667 = vrot.lane.b32.xlu0 %v665, 64
    %v668 = vpop.permute.xlu0 %667
    %v670 = vmul.f32 %v653, %v668
    %v671 = vpack.c.bf16 %v574, %v574
    %673 = vrot.lane.b32.xlu0 %v671, 32
    %v674 = vpop.permute.xlu0 %673
    %v676 = vsel %vm226, %v674, 0
    %678 = vmatprep.subr.bf16.mxu0 0
    %679 = vmatpush1.bf16.msra.mxu0 %v435
    %680 = vmatprep.subr.bf16.mxu0 0
    %681 = vmatpush1.bf16.msra.mxu0 %v436
    %682 = vmatprep.subr.bf16.mxu0 0
    %683 = vmatpush1.bf16.msra.mxu0 0
    %684 = vmatprep.subr.bf16.mxu0 0
    %685 = vmatpush1.bf16.msra.mxu0 0
    %686 = vmatprep.subr.bf16.mxu0 0
    %687 = vmatpush1.bf16.msra.mxu0 0
    %688 = vmatprep.subr.bf16.mxu0 0
    %689 = vmatpush1.bf16.msra.mxu0 0
    %690 = vmatprep.subr.bf16.mxu0 0
    %691 = vmatpush1.bf16.msra.mxu0 0
    %692 = vmatprep.subr.bf16.mxu0 0
    %693 = vmatpush1.bf16.msra.mxu0 0
    %694 = vmatprep.subr.bf16.mxu0 0
    %695 = vmatpush1.bf16.msra.mxu0 0
    %696 = vmatprep.subr.bf16.mxu0 0
    %697 = vmatpush1.bf16.msra.mxu0 0
    %698 = vmatprep.subr.bf16.mxu0 0
    %699 = vmatpush1.bf16.msra.mxu0 0
    %700 = vmatprep.subr.bf16.mxu0 0
    %701 = vmatpush1.bf16.msra.mxu0 0
    %702 = vmatprep.subr.bf16.mxu0 0
    %703 = vmatpush1.bf16.msra.mxu0 0
    %704 = vmatprep.subr.bf16.mxu0 0
    %705 = vmatpush1.bf16.msra.mxu0 0
    %706 = vmatprep.subr.bf16.mxu0 0
    %707 = vmatpush1.bf16.msra.mxu0 0
    %708 = vmatprep.subr.bf16.mxu0 0
    %709 = vmatpush1.bf16.msra.mxu0 0
    %710 = vmatprep.mubr.bf16.mxu0 0
    %711 = vmatmul.mubr.bf16.gmra.mrb[0].mxu0 %v676
    %v712 = vpop.f32.mrb[0].mxu0
    %v713 = vadd.f32 0.0, %v712
    %v714 = vpop.f32.mrb[0].mxu0
    %v715 = vpop.f32.mrb[0].mxu0
    %v716 = vpop.f32.mrb[0].mxu0
    %717 = vdwg.mxu0
    %v718 = vadd.f32 %v392, %v713
    %v719 = vmul.f32 %v718, %v309
    %v720 = vtanh.pop %v719
    %v721 = vadd.f32 %v720, 1.0
    %v722 = vmul.f32 %v721, 0.5
    %v723 = vsel %vm308, %v720, %v722
    %v724 = vmul.f32 %v723, %v568
    %726 = vrot.lane.b32.xlu0 %v723, 64
    %v727 = vpop.permute.xlu0 %726
    %v729 = vmul.f32 %v723, %v727
    %731 = vrot.lane.b32.xlu0 %v729, 32
    %v732 = vpop.permute.xlu0 %731
    %v734 = vadd.f32 %v724, %v732
    %v735 = vtanh.pop %v734
    %737 = vrot.lane.b32.xlu0 %v735, 64
    %v738 = vpop.permute.xlu0 %737
    %v740 = vmul.f32 %v723, %v738
    %v741 = vpack.c.bf16 %v670, %v670
    %743 = vrot.lane.b32.xlu0 %v741, 64
    %v744 = vpop.permute.xlu0 %743
    %v746 = vsel %vm226, %v674, %v744
    %v747 = vsel %vm606, %v746, 0
    %749 = vmatprep.subr.bf16.mxu0 0
    %750 = vmatpush1.bf16.msra.mxu0 %v598
    %751 = vmatprep.subr.bf16.mxu0 0
    %752 = vmatpush1.bf16.msra.mxu0 %v599
    %753 = vmatprep.subr.bf16.mxu0 0
    %754 = vmatpush1.bf16.msra.mxu0 %v600
    %755 = vmatprep.subr.bf16.mxu0 0
    %756 = vmatpush1.bf16.msra.mxu0 %v601
    %757 = vmatprep.subr.bf16.mxu0 0
    %758 = vmatpush1.bf16.msra.mxu0 0
    %759 = vmatprep.subr.bf16.mxu0 0
    %760 = vmatpush1.bf16.msra.mxu0 0
    %761 = vmatprep.subr.bf16.mxu0 0
    %762 = vmatpush1.bf16.msra.mxu0 0
    %763 = vmatprep.subr.bf16.mxu0 0
    %764 = vmatpush1.bf16.msra.mxu0 0
    %765 = vmatprep.subr.bf16.mxu0 0
    %766 = vmatpush1.bf16.msra.mxu0 0
    %767 = vmatprep.subr.bf16.mxu0 0
    %768 = vmatpush1.bf16.msra.mxu0 0
    %769 = vmatprep.subr.bf16.mxu0 0
    %770 = vmatpush1.bf16.msra.mxu0 0
    %771 = vmatprep.subr.bf16.mxu0 0
    %772 = vmatpush1.bf16.msra.mxu0 0
    %773 = vmatprep.subr.bf16.mxu0 0
    %774 = vmatpush1.bf16.msra.mxu0 0
    %775 = vmatprep.subr.bf16.mxu0 0
    %776 = vmatpush1.bf16.msra.mxu0 0
    %777 = vmatprep.subr.bf16.mxu0 0
    %778 = vmatpush1.bf16.msra.mxu0 0
    %779 = vmatprep.subr.bf16.mxu0 0
    %780 = vmatpush1.bf16.msra.mxu0 0
    %781 = vmatprep.mubr.bf16.mxu0 0
    %782 = vmatmul.mubr.bf16.gmra.mrb[0].mxu0 %v747
    %v783 = vpop.f32.mrb[0].mxu0
    %v784 = vadd.f32 %v580, %v783
    %v785 = vpop.f32.mrb[0].mxu0
    %v786 = vpop.f32.mrb[0].mxu0
    %v787 = vpop.f32.mrb[0].mxu0
    %788 = vdwg.mxu0
    %v789 = vmul.f32 %v784, %v309
    %v790 = vtanh.pop %v789
    %v791 = vadd.f32 %v790, 1.0
    %v792 = vmul.f32 %v791, 0.5
    %v793 = vsel %vm308, %v790, %v792
    %v794 = vmul.f32 %v793, %v664
    %796 = vrot.lane.b32.xlu0 %v793, 64
    %v797 = vpop.permute.xlu0 %796
    %v799 = vmul.f32 %v793, %v797
    %801 = vrot.lane.b32.xlu0 %v799, 32
    %v802 = vpop.permute.xlu0 %801
    %v804 = vadd.f32 %v794, %v802
    %v805 = vtanh.pop %v804
    %807 = vrot.lane.b32.xlu0 %v805, 64
    %v808 = vpop.permute.xlu0 %807
    %v810 = vmul.f32 %v793, %v808
    %v811 = vpack.c.bf16 %v740, %v740
    %813 = vrot.lane.b32.xlu0 %v811, 32
    %v814 = vpop.permute.xlu0 %813
    %v816 = vsel %vm226, %v814, 0
    %818 = vmatprep.subr.bf16.mxu0 0
    %819 = vmatpush1.bf16.msra.mxu0 %v435
    %820 = vmatprep.subr.bf16.mxu0 0
    %821 = vmatpush1.bf16.msra.mxu0 %v436
    %822 = vmatprep.subr.bf16.mxu0 0
    %823 = vmatpush1.bf16.msra.mxu0 0
    %824 = vmatprep.subr.bf16.mxu0 0
    %825 = vmatpush1.bf16.msra.mxu0 0
    %826 = vmatprep.subr.bf16.mxu0 0
    %827 = vmatpush1.bf16.msra.mxu0 0
    %828 = vmatprep.subr.bf16.mxu0 0
    %829 = vmatpush1.bf16.msra.mxu0 0
    %830 = vmatprep.subr.bf16.mxu0 0
    %831 = vmatpush1.bf16.msra.mxu0 0
    %832 = vmatprep.subr.bf16.mxu0 0
    %833 = vmatpush1.bf16.msra.mxu0 0
    %834 = vmatprep.subr.bf16.mxu0 0
    %835 = vmatpush1.bf16.msra.mxu0 0
    %836 = vmatprep.subr.bf16.mxu0 0
    %837 = vmatpush1.bf16.msra.mxu0 0
    %838 = vmatprep.subr.bf16.mxu0 0
    %839 = vmatpush1.bf16.msra.mxu0 0
    %840 = vmatprep.subr.bf16.mxu0 0
    %841 = vmatpush1.bf16.msra.mxu0 0
    %842 = vmatprep.subr.bf16.mxu0 0
    %843 = vmatpush1.bf16.msra.mxu0 0
    %844 = vmatprep.subr.bf16.mxu0 0
    %845 = vmatpush1.bf16.msra.mxu0 0
    %846 = vmatprep.subr.bf16.mxu0 0
    %847 = vmatpush1.bf16.msra.mxu0 0
    %848 = vmatprep.subr.bf16.mxu0 0
    %849 = vmatpush1.bf16.msra.mxu0 0
    %850 = vmatprep.mubr.bf16.mxu0 0
    %851 = vmatmul.mubr.bf16.gmra.mrb[0].mxu0 %v816
    %v852 = vpop.f32.mrb[0].mxu0
    %v853 = vadd.f32 0.0, %v852
    %v854 = vpop.f32.mrb[0].mxu0
    %v855 = vpop.f32.mrb[0].mxu0
    %v856 = vpop.f32.mrb[0].mxu0
    %857 = vdwg.mxu0
    %v858 = vadd.f32 %v395, %v853
    %v859 = vmul.f32 %v858, %v309
    %v860 = vtanh.pop %v859
    %v861 = vadd.f32 %v860, 1.0
    %v862 = vmul.f32 %v861, 0.5
    %v863 = vsel %vm308, %v860, %v862
    %v864 = vmul.f32 %v863, %v734
    %866 = vrot.lane.b32.xlu0 %v863, 64
    %v867 = vpop.permute.xlu0 %866
    %v869 = vmul.f32 %v863, %v867
    %871 = vrot.lane.b32.xlu0 %v869, 32
    %v872 = vpop.permute.xlu0 %871
    %v874 = vadd.f32 %v864, %v872
    %v875 = vtanh.pop %v874
    %877 = vrot.lane.b32.xlu0 %v875, 64
    %v878 = vpop.permute.xlu0 %877
    %v880 = vmul.f32 %v863, %v878
    %v881 = vpack.c.bf16 %v810, %v810
    %883 = vrot.lane.b32.xlu0 %v881, 64
    %v884 = vpop.permute.xlu0 %883
    %v886 = vsel %vm226, %v814, %v884
    %v887 = vsel %vm606, %v886, 0
    %889 = vmatprep.subr.bf16.mxu0 0
    %890 = vmatpush1.bf16.msra.mxu0 %v598
    %891 = vmatprep.subr.bf16.mxu0 0
    %892 = vmatpush1.bf16.msra.mxu0 %v599
    %893 = vmatprep.subr.bf16.mxu0 0
    %894 = vmatpush1.bf16.msra.mxu0 %v600
    %895 = vmatprep.subr.bf16.mxu0 0
    %896 = vmatpush1.bf16.msra.mxu0 %v601
    %897 = vmatprep.subr.bf16.mxu0 0
    %898 = vmatpush1.bf16.msra.mxu0 0
    %899 = vmatprep.subr.bf16.mxu0 0
    %900 = vmatpush1.bf16.msra.mxu0 0
    %901 = vmatprep.subr.bf16.mxu0 0
    %902 = vmatpush1.bf16.msra.mxu0 0
    %903 = vmatprep.subr.bf16.mxu0 0
    %904 = vmatpush1.bf16.msra.mxu0 0
    %905 = vmatprep.subr.bf16.mxu0 0
    %906 = vmatpush1.bf16.msra.mxu0 0
    %907 = vmatprep.subr.bf16.mxu0 0
    %908 = vmatpush1.bf16.msra.mxu0 0
    %909 = vmatprep.subr.bf16.mxu0 0
    %910 = vmatpush1.bf16.msra.mxu0 0
    %911 = vmatprep.subr.bf16.mxu0 0
    %912 = vmatpush1.bf16.msra.mxu0 0
    %913 = vmatprep.subr.bf16.mxu0 0
    %914 = vmatpush1.bf16.msra.mxu0 0
    %915 = vmatprep.subr.bf16.mxu0 0
    %916 = vmatpush1.bf16.msra.mxu0 0
    %917 = vmatprep.subr.bf16.mxu0 0
    %918 = vmatpush1.bf16.msra.mxu0 0
    %919 = vmatprep.subr.bf16.mxu0 0
    %920 = vmatpush1.bf16.msra.mxu0 0
    %921 = vmatprep.mubr.bf16.mxu0 0
    %922 = vmatmul.mubr.bf16.gmra.mrb[0].mxu0 %v887
    %v923 = vpop.f32.mrb[0].mxu0
    %v924 = vadd.f32 %v580, %v923
    %v925 = vpop.f32.mrb[0].mxu0
    %v926 = vpop.f32.mrb[0].mxu0
    %v927 = vpop.f32.mrb[0].mxu0
    %928 = vdwg.mxu0
    %v929 = vmul.f32 %v924, %v309
    %v930 = vtanh.pop %v929
    %v931 = vadd.f32 %v930, 1.0
    %v932 = vmul.f32 %v931, 0.5
    %v933 = vsel %vm308, %v930, %v932
    %v934 = vmul.f32 %v933, %v804
    %936 = vrot.lane.b32.xlu0 %v933, 64
    %v937 = vpop.permute.xlu0 %936
    %v939 = vmul.f32 %v933, %v937
    %941 = vrot.lane.b32.xlu0 %v939, 32
    %v942 = vpop.permute.xlu0 %941
    %v944 = vadd.f32 %v934, %v942
    %v945 = vtanh.pop %v944
    %947 = vrot.lane.b32.xlu0 %v945, 64
    %v948 = vpop.permute.xlu0 %947
    %v950 = vmul.f32 %v933, %v948
    %v951 = vpack.c.bf16 %v880, %v880
    %953 = vrot.lane.b32.xlu0 %v951, 32
    %v954 = vpop.permute.xlu0 %953
    %v956 = vsel %vm226, %v954, 0
    %958 = vmatprep.subr.bf16.mxu0 0
    %959 = vmatpush1.bf16.msra.mxu0 %v435
    %960 = vmatprep.subr.bf16.mxu0 0
    %961 = vmatpush1.bf16.msra.mxu0 %v436
    %962 = vmatprep.subr.bf16.mxu0 0
    %963 = vmatpush1.bf16.msra.mxu0 0
    %964 = vmatprep.subr.bf16.mxu0 0
    %965 = vmatpush1.bf16.msra.mxu0 0
    %966 = vmatprep.subr.bf16.mxu0 0
    %967 = vmatpush1.bf16.msra.mxu0 0
    %968 = vmatprep.subr.bf16.mxu0 0
    %969 = vmatpush1.bf16.msra.mxu0 0
    %970 = vmatprep.subr.bf16.mxu0 0
    %971 = vmatpush1.bf16.msra.mxu0 0
    %972 = vmatprep.subr.bf16.mxu0 0
    %973 = vmatpush1.bf16.msra.mxu0 0
    %974 = vmatprep.subr.bf16.mxu0 0
    %975 = vmatpush1.bf16.msra.mxu0 0
    %976 = vmatprep.subr.bf16.mxu0 0
    %977 = vmatpush1.bf16.msra.mxu0 0
    %978 = vmatprep.subr.bf16.mxu0 0
    %979 = vmatpush1.bf16.msra.mxu0 0
    %980 = vmatprep.subr.bf16.mxu0 0
    %981 = vmatpush1.bf16.msra.mxu0 0
    %982 = vmatprep.subr.bf16.mxu0 0
    %983 = vmatpush1.bf16.msra.mxu0 0
    %984 = vmatprep.subr.bf16.mxu0 0
    %985 = vmatpush1.bf16.msra.mxu0 0
    %986 = vmatprep.subr.bf16.mxu0 0
    %987 = vmatpush1.bf16.msra.mxu0 0
    %988 = vmatprep.subr.bf16.mxu0 0
    %989 = vmatpush1.bf16.msra.mxu0 0
    %990 = vmatprep.mubr.bf16.mxu0 0
    %991 = vmatmul.mubr.bf16.gmra.mrb[0].mxu0 %v956
    %v992 = vpop.f32.mrb[0].mxu0
    %v993 = vadd.f32 0.0, %v992
    %v994 = vpop.f32.mrb[0].mxu0
    %v995 = vpop.f32.mrb[0].mxu0
    %v996 = vpop.f32.mrb[0].mxu0
    %997 = vdwg.mxu0
    %v998 = vadd.f32 %v400, %v993
    %v999 = vmul.f32 %v998, %v309
    %v1000 = vtanh.pop %v999
    %v1001 = vadd.f32 %v1000, 1.0
    %v1002 = vmul.f32 %v1001, 0.5
    %v1003 = vsel %vm308, %v1000, %v1002
    %v1004 = vmul.f32 %v1003, %v874
    %1006 = vrot.lane.b32.xlu0 %v1003, 64
    %v1007 = vpop.permute.xlu0 %1006
    %v1009 = vmul.f32 %v1003, %v1007
    %1011 = vrot.lane.b32.xlu0 %v1009, 32
    %v1012 = vpop.permute.xlu0 %1011
    %v1014 = vadd.f32 %v1004, %v1012
    %v1015 = vtanh.pop %v1014
    %1017 = vrot.lane.b32.xlu0 %v1015, 64
    %v1018 = vpop.permute.xlu0 %1017
    %v1020 = vmul.f32 %v1003, %v1018
    %v1021 = vpack.c.bf16 %v950, %v950
    %1023 = vrot.lane.b32.xlu0 %v1021, 64
    %v1024 = vpop.permute.xlu0 %1023
    %v1026 = vsel %vm226, %v954, %v1024
    %v1027 = vsel %vm606, %v1026, 0
    %1029 = vmatprep.subr.bf16.mxu0 0
    %1030 = vmatpush1.bf16.msra.mxu0 %v598
    %1031 = vmatprep.subr.bf16.mxu0 0
    %1032 = vmatpush1.bf16.msra.mxu0 %v599
    %1033 = vmatprep.subr.bf16.mxu0 0
    %1034 = vmatpush1.bf16.msra.mxu0 %v600
    %1035 = vmatprep.subr.bf16.mxu0 0
    %1036 = vmatpush1.bf16.msra.mxu0 %v601
    %1037 = vmatprep.subr.bf16.mxu0 0
    %1038 = vmatpush1.bf16.msra.mxu0 0
    %1039 = vmatprep.subr.bf16.mxu0 0
    %1040 = vmatpush1.bf16.msra.mxu0 0
    %1041 = vmatprep.subr.bf16.mxu0 0
    %1042 = vmatpush1.bf16.msra.mxu0 0
    %1043 = vmatprep.subr.bf16.mxu0 0
    %1044 = vmatpush1.bf16.msra.mxu0 0
    %1045 = vmatprep.subr.bf16.mxu0 0
    %1046 = vmatpush1.bf16.msra.mxu0 0
    %1047 = vmatprep.subr.bf16.mxu0 0
    %1048 = vmatpush1.bf16.msra.mxu0 0
    %1049 = vmatprep.subr.bf16.mxu0 0
    %1050 = vmatpush1.bf16.msra.mxu0 0
    %1051 = vmatprep.subr.bf16.mxu0 0
    %1052 = vmatpush1.bf16.msra.mxu0 0
    %1053 = vmatprep.subr.bf16.mxu0 0
    %1054 = vmatpush1.bf16.msra.mxu0 0
    %1055 = vmatprep.subr.bf16.mxu0 0
    %1056 = vmatpush1.bf16.msra.mxu0 0
    %1057 = vmatprep.subr.bf16.mxu0 0
    %1058 = vmatpush1.bf16.msra.mxu0 0
    %1059 = vmatprep.subr.bf16.mxu0 0
    %1060 = vmatpush1.bf16.msra.mxu0 0
    %1061 = vmatprep.mubr.bf16.mxu0 0
    %1062 = vmatmul.mubr.bf16.gmra.mrb[0].mxu0 %v1027
    %v1063 = vpop.f32.mrb[0].mxu0
    %v1064 = vadd.f32 %v580, %v1063
    %v1065 = vpop.f32.mrb[0].mxu0
    %v1066 = vpop.f32.mrb[0].mxu0
    %v1067 = vpop.f32.mrb[0].mxu0
    %1068 = vdwg.mxu0
    %v1069 = vmul.f32 %v1064, %v309
    %v1070 = vtanh.pop %v1069
    %v1071 = vadd.f32 %v1070, 1.0
    %v1072 = vmul.f32 %v1071, 0.5
    %v1073 = vsel %vm308, %v1070, %v1072
    %v1074 = vmul.f32 %v1073, %v944
    %1076 = vrot.lane.b32.xlu0 %v1073, 64
    %v1077 = vpop.permute.xlu0 %1076
    %v1079 = vmul.f32 %v1073, %v1077
    %1081 = vrot.lane.b32.xlu0 %v1079, 32
    %v1082 = vpop.permute.xlu0 %1081
    %v1084 = vadd.f32 %v1074, %v1082
    %v1085 = vtanh.pop %v1084
    %1087 = vrot.lane.b32.xlu0 %v1085, 64
    %v1088 = vpop.permute.xlu0 %1087
    %v1090 = vmul.f32 %v1073, %v1088
    %v1091 = vpack.c.bf16 %v1020, %v1020
    %1093 = vrot.lane.b32.xlu0 %v1091, 32
    %v1094 = vpop.permute.xlu0 %1093
    %v1096 = vsel %vm226, %v1094, 0
    %1098 = vmatprep.subr.bf16.mxu0 0
    %1099 = vmatpush1.bf16.msra.mxu0 %v435
    %1100 = vmatprep.subr.bf16.mxu0 0
    %1101 = vmatpush1.bf16.msra.mxu0 %v436
    %1102 = vmatprep.subr.bf16.mxu0 0
    %1103 = vmatpush1.bf16.msra.mxu0 0
    %1104 = vmatprep.subr.bf16.mxu0 0
    %1105 = vmatpush1.bf16.msra.mxu0 0
    %1106 = vmatprep.subr.bf16.mxu0 0
    %1107 = vmatpush1.bf16.msra.mxu0 0
    %1108 = vmatprep.subr.bf16.mxu0 0
    %1109 = vmatpush1.bf16.msra.mxu0 0
    %1110 = vmatprep.subr.bf16.mxu0 0
    %1111 = vmatpush1.bf16.msra.mxu0 0
    %1112 = vmatprep.subr.bf16.mxu0 0
    %1113 = vmatpush1.bf16.msra.mxu0 0
    %1114 = vmatprep.subr.bf16.mxu0 0
    %1115 = vmatpush1.bf16.msra.mxu0 0
    %1116 = vmatprep.subr.bf16.mxu0 0
    %1117 = vmatpush1.bf16.msra.mxu0 0
    %1118 = vmatprep.subr.bf16.mxu0 0
    %1119 = vmatpush1.bf16.msra.mxu0 0
    %1120 = vmatprep.subr.bf16.mxu0 0
    %1121 = vmatpush1.bf16.msra.mxu0 0
    %1122 = vmatprep.subr.bf16.mxu0 0
    %1123 = vmatpush1.bf16.msra.mxu0 0
    %1124 = vmatprep.subr.bf16.mxu0 0
    %1125 = vmatpush1.bf16.msra.mxu0 0
    %1126 = vmatprep.subr.bf16.mxu0 0
    %1127 = vmatpush1.bf16.msra.mxu0 0
    %1128 = vmatprep.subr.bf16.mxu0 0
    %1129 = vmatpush1.bf16.msra.mxu0 0
    %1130 = vmatprep.mubr.bf16.mxu0 0
    %1131 = vmatmul.mubr.bf16.gmra.mrb[0].mxu0 %v1096
    %v1132 = vpop.f32.mrb[0].mxu0
    %v1133 = vadd.f32 0.0, %v1132
    %v1134 = vpop.f32.mrb[0].mxu0
    %v1135 = vpop.f32.mrb[0].mxu0
    %v1136 = vpop.f32.mrb[0].mxu0
    %1137 = vdwg.mxu0
    %v1138 = vadd.f32 %v403, %v1133
    %v1139 = vmul.f32 %v1138, %v309
    %v1140 = vtanh.pop %v1139
    %v1141 = vadd.f32 %v1140, 1.0
    %v1142 = vmul.f32 %v1141, 0.5
    %v1143 = vsel %vm308, %v1140, %v1142
    %v1144 = vmul.f32 %v1143, %v1014
    %1146 = vrot.lane.b32.xlu0 %v1143, 64
    %v1147 = vpop.permute.xlu0 %1146
    %v1149 = vmul.f32 %v1143, %v1147
    %1151 = vrot.lane.b32.xlu0 %v1149, 32
    %v1152 = vpop.permute.xlu0 %1151
    %v1154 = vadd.f32 %v1144, %v1152
    %v1155 = vtanh.pop %v1154
    %1157 = vrot.lane.b32.xlu0 %v1155, 64
    %v1158 = vpop.permute.xlu0 %1157
    %v1160 = vmul.f32 %v1143, %v1158
    %v1161 = vpack.c.bf16 %v1090, %v1090
    %1163 = vrot.lane.b32.xlu0 %v1161, 64
    %v1164 = vpop.permute.xlu0 %1163
    %v1166 = vsel %vm226, %v1094, %v1164
    %v1167 = vsel %vm606, %v1166, 0
    %1169 = vmatprep.subr.bf16.mxu0 0
    %1170 = vmatpush1.bf16.msra.mxu0 %v598
    %1171 = vmatprep.subr.bf16.mxu0 0
    %1172 = vmatpush1.bf16.msra.mxu0 %v599
    %1173 = vmatprep.subr.bf16.mxu0 0
    %1174 = vmatpush1.bf16.msra.mxu0 %v600
    %1175 = vmatprep.subr.bf16.mxu0 0
    %1176 = vmatpush1.bf16.msra.mxu0 %v601
    %1177 = vmatprep.subr.bf16.mxu0 0
    %1178 = vmatpush1.bf16.msra.mxu0 0
    %1179 = vmatprep.subr.bf16.mxu0 0
    %1180 = vmatpush1.bf16.msra.mxu0 0
    %1181 = vmatprep.subr.bf16.mxu0 0
    %1182 = vmatpush1.bf16.msra.mxu0 0
    %1183 = vmatprep.subr.bf16.mxu0 0
    %1184 = vmatpush1.bf16.msra.mxu0 0
    %1185 = vmatprep.subr.bf16.mxu0 0
    %1186 = vmatpush1.bf16.msra.mxu0 0
    %1187 = vmatprep.subr.bf16.mxu0 0
    %1188 = vmatpush1.bf16.msra.mxu0 0
    %1189 = vmatprep.subr.bf16.mxu0 0
    %1190 = vmatpush1.bf16.msra.mxu0 0
    %1191 = vmatprep.subr.bf16.mxu0 0
    %1192 = vmatpush1.bf16.msra.mxu0 0
    %1193 = vmatprep.subr.bf16.mxu0 0
    %1194 = vmatpush1.bf16.msra.mxu0 0
    %1195 = vmatprep.subr.bf16.mxu0 0
    %1196 = vmatpush1.bf16.msra.mxu0 0
    %1197 = vmatprep.subr.bf16.mxu0 0
    %1198 = vmatpush1.bf16.msra.mxu0 0
    %1199 = vmatprep.subr.bf16.mxu0 0
    %1200 = vmatpush1.bf16.msra.mxu0 0
    %1201 = vmatprep.mubr.bf16.mxu0 0
    %1202 = vmatmul.mubr.bf16.gmra.mrb[0].mxu0 %v1167
    %v1203 = vpop.f32.mrb[0].mxu0
    %v1204 = vadd.f32 %v580, %v1203
    %v1205 = vpop.f32.mrb[0].mxu0
    %v1206 = vpop.f32.mrb[0].mxu0
    %v1207 = vpop.f32.mrb[0].mxu0
    %1208 = vdwg.mxu0
    %v1209 = vmul.f32 %v1204, %v309
    %v1210 = vtanh.pop %v1209
    %v1211 = vadd.f32 %v1210, 1.0
    %v1212 = vmul.f32 %v1211, 0.5
    %v1213 = vsel %vm308, %v1210, %v1212
    %v1214 = vmul.f32 %v1213, %v1084
    %1216 = vrot.lane.b32.xlu0 %v1213, 64
    %v1217 = vpop.permute.xlu0 %1216
    %v1219 = vmul.f32 %v1213, %v1217
    %1221 = vrot.lane.b32.xlu0 %v1219, 32
    %v1222 = vpop.permute.xlu0 %1221
    %v1224 = vadd.f32 %v1214, %v1222
    %v1225 = vtanh.pop %v1224
    %1227 = vrot.lane.b32.xlu0 %v1225, 64
    %v1228 = vpop.permute.xlu0 %1227
    %v1230 = vmul.f32 %v1213, %v1228
    %v1231 = vpack.c.bf16 %v1160, %v1160
    %1233 = vrot.lane.b32.xlu0 %v1231, 32
    %v1234 = vpop.permute.xlu0 %1233
    %v1236 = vsel %vm226, %v1234, 0
    %1238 = vmatprep.subr.bf16.mxu0 0
    %1239 = vmatpush1.bf16.msra.mxu0 %v435
    %1240 = vmatprep.subr.bf16.mxu0 0
    %1241 = vmatpush1.bf16.msra.mxu0 %v436
    %1242 = vmatprep.subr.bf16.mxu0 0
    %1243 = vmatpush1.bf16.msra.mxu0 0
    %1244 = vmatprep.subr.bf16.mxu0 0
    %1245 = vmatpush1.bf16.msra.mxu0 0
    %1246 = vmatprep.subr.bf16.mxu0 0
    %1247 = vmatpush1.bf16.msra.mxu0 0
    %1248 = vmatprep.subr.bf16.mxu0 0
    %1249 = vmatpush1.bf16.msra.mxu0 0
    %1250 = vmatprep.subr.bf16.mxu0 0
    %1251 = vmatpush1.bf16.msra.mxu0 0
    %1252 = vmatprep.subr.bf16.mxu0 0
    %1253 = vmatpush1.bf16.msra.mxu0 0
    %1254 = vmatprep.subr.bf16.mxu0 0
    %1255 = vmatpush1.bf16.msra.mxu0 0
    %1256 = vmatprep.subr.bf16.mxu0 0
    %1257 = vmatpush1.bf16.msra.mxu0 0
    %1258 = vmatprep.subr.bf16.mxu0 0
    %1259 = vmatpush1.bf16.msra.mxu0 0
    %1260 = vmatprep.subr.bf16.mxu0 0
    %1261 = vmatpush1.bf16.msra.mxu0 0
    %1262 = vmatprep.subr.bf16.mxu0 0
    %1263 = vmatpush1.bf16.msra.mxu0 0
    %1264 = vmatprep.subr.bf16.mxu0 0
    %1265 = vmatpush1.bf16.msra.mxu0 0
    %1266 = vmatprep.subr.bf16.mxu0 0
    %1267 = vmatpush1.bf16.msra.mxu0 0
    %1268 = vmatprep.subr.bf16.mxu0 0
    %1269 = vmatpush1.bf16.msra.mxu0 0
    %1270 = vmatprep.mubr.bf16.mxu0 0
    %1271 = vmatmul.mubr.bf16.gmra.mrb[0].mxu0 %v1236
    %v1272 = vpop.f32.mrb[0].mxu0
    %v1273 = vadd.f32 0.0, %v1272
    %v1274 = vpop.f32.mrb[0].mxu0
    %v1275 = vpop.f32.mrb[0].mxu0
    %v1276 = vpop.f32.mrb[0].mxu0
    %1277 = vdwg.mxu0
    %v1278 = vadd.f32 %v408, %v1273
    %v1279 = vmul.f32 %v1278, %v309
    %v1280 = vtanh.pop %v1279
    %v1281 = vadd.f32 %v1280, 1.0
    %v1282 = vmul.f32 %v1281, 0.5
    %v1283 = vsel %vm308, %v1280, %v1282
    %v1284 = vmul.f32 %v1283, %v1154
    %1286 = vrot.lane.b32.xlu0 %v1283, 64
    %v1287 = vpop.permute.xlu0 %1286
    %v1289 = vmul.f32 %v1283, %v1287
    %1291 = vrot.lane.b32.xlu0 %v1289, 32
    %v1292 = vpop.permute.xlu0 %1291
    %v1294 = vadd.f32 %v1284, %v1292
    %v1295 = vtanh.pop %v1294
    %1297 = vrot.lane.b32.xlu0 %v1295, 64
    %v1298 = vpop.permute.xlu0 %1297
    %v1300 = vmul.f32 %v1283, %v1298
    %v1301 = vpack.c.bf16 %v1230, %v1230
    %1303 = vrot.lane.b32.xlu0 %v1301, 64
    %v1304 = vpop.permute.xlu0 %1303
    %v1306 = vsel %vm226, %v1234, %v1304
    %v1307 = vsel %vm606, %v1306, 0
    %1309 = vmatprep.subr.bf16.mxu0 0
    %1310 = vmatpush1.bf16.msra.mxu0 %v598
    %1311 = vmatprep.subr.bf16.mxu0 0
    %1312 = vmatpush1.bf16.msra.mxu0 %v599
    %1313 = vmatprep.subr.bf16.mxu0 0
    %1314 = vmatpush1.bf16.msra.mxu0 %v600
    %1315 = vmatprep.subr.bf16.mxu0 0
    %1316 = vmatpush1.bf16.msra.mxu0 %v601
    %1317 = vmatprep.subr.bf16.mxu0 0
    %1318 = vmatpush1.bf16.msra.mxu0 0
    %1319 = vmatprep.subr.bf16.mxu0 0
    %1320 = vmatpush1.bf16.msra.mxu0 0
    %1321 = vmatprep.subr.bf16.mxu0 0
    %1322 = vmatpush1.bf16.msra.mxu0 0
    %1323 = vmatprep.subr.bf16.mxu0 0
    %1324 = vmatpush1.bf16.msra.mxu0 0
    %1325 = vmatprep.subr.bf16.mxu0 0
    %1326 = vmatpush1.bf16.msra.mxu0 0
    %1327 = vmatprep.subr.bf16.mxu0 0
    %1328 = vmatpush1.bf16.msra.mxu0 0
    %1329 = vmatprep.subr.bf16.mxu0 0
    %1330 = vmatpush1.bf16.msra.mxu0 0
    %1331 = vmatprep.subr.bf16.mxu0 0
    %1332 = vmatpush1.bf16.msra.mxu0 0
    %1333 = vmatprep.subr.bf16.mxu0 0
    %1334 = vmatpush1.bf16.msra.mxu0 0
    %1335 = vmatprep.subr.bf16.mxu0 0
    %1336 = vmatpush1.bf16.msra.mxu0 0
    %1337 = vmatprep.subr.bf16.mxu0 0
    %1338 = vmatpush1.bf16.msra.mxu0 0
    %1339 = vmatprep.subr.bf16.mxu0 0
    %1340 = vmatpush1.bf16.msra.mxu0 0
    %1341 = vmatprep.mubr.bf16.mxu0 0
    %1342 = vmatmul.mubr.bf16.gmra.mrb[0].mxu0 %v1307
    %v1343 = vpop.f32.mrb[0].mxu0
    %v1344 = vadd.f32 %v580, %v1343
    %v1345 = vpop.f32.mrb[0].mxu0
    %v1346 = vpop.f32.mrb[0].mxu0
    %v1347 = vpop.f32.mrb[0].mxu0
    %1348 = vdwg.mxu0
    %v1349 = vmul.f32 %v1344, %v309
    %v1350 = vtanh.pop %v1349
    %v1351 = vadd.f32 %v1350, 1.0
    %v1352 = vmul.f32 %v1351, 0.5
    %v1353 = vsel %vm308, %v1350, %v1352
    %v1354 = vmul.f32 %v1353, %v1224
    %1356 = vrot.lane.b32.xlu0 %v1353, 64
    %v1357 = vpop.permute.xlu0 %1356
    %v1359 = vmul.f32 %v1353, %v1357
    %1361 = vrot.lane.b32.xlu0 %v1359, 32
    %v1362 = vpop.permute.xlu0 %1361
    %v1364 = vadd.f32 %v1354, %v1362
    %v1365 = vtanh.pop %v1364
    %1367 = vrot.lane.b32.xlu0 %v1365, 64
    %v1368 = vpop.permute.xlu0 %1367
    %v1370 = vmul.f32 %v1353, %v1368
    %v1371 = vpack.c.bf16 %v1300, %v1300
    %1373 = vrot.lane.b32.xlu0 %v1371, 32
    %v1374 = vpop.permute.xlu0 %1373
    %v1376 = vsel %vm226, %v1374, 0
    %1378 = vmatprep.subr.bf16.mxu0 0
    %1379 = vmatpush1.bf16.msra.mxu0 %v435
    %1380 = vmatprep.subr.bf16.mxu0 0
    %1381 = vmatpush1.bf16.msra.mxu0 %v436
    %1382 = vmatprep.subr.bf16.mxu0 0
    %1383 = vmatpush1.bf16.msra.mxu0 0
    %1384 = vmatprep.subr.bf16.mxu0 0
    %1385 = vmatpush1.bf16.msra.mxu0 0
    %1386 = vmatprep.subr.bf16.mxu0 0
    %1387 = vmatpush1.bf16.msra.mxu0 0
    %1388 = vmatprep.subr.bf16.mxu0 0
    %1389 = vmatpush1.bf16.msra.mxu0 0
    %1390 = vmatprep.subr.bf16.mxu0 0
    %1391 = vmatpush1.bf16.msra.mxu0 0
    %1392 = vmatprep.subr.bf16.mxu0 0
    %1393 = vmatpush1.bf16.msra.mxu0 0
    %1394 = vmatprep.subr.bf16.mxu0 0
    %1395 = vmatpush1.bf16.msra.mxu0 0
    %1396 = vmatprep.subr.bf16.mxu0 0
    %1397 = vmatpush1.bf16.msra.mxu0 0
    %1398 = vmatprep.subr.bf16.mxu0 0
    %1399 = vmatpush1.bf16.msra.mxu0 0
    %1400 = vmatprep.subr.bf16.mxu0 0
    %1401 = vmatpush1.bf16.msra.mxu0 0
    %1402 = vmatprep.subr.bf16.mxu0 0
    %1403 = vmatpush1.bf16.msra.mxu0 0
    %1404 = vmatprep.subr.bf16.mxu0 0
    %1405 = vmatpush1.bf16.msra.mxu0 0
    %1406 = vmatprep.subr.bf16.mxu0 0
    %1407 = vmatpush1.bf16.msra.mxu0 0
    %1408 = vmatprep.subr.bf16.mxu0 0
    %1409 = vmatpush1.bf16.msra.mxu0 0
    %1410 = vmatprep.mubr.bf16.mxu0 0
    %1411 = vmatmul.mubr.bf16.gmra.mrb[0].mxu0 %v1376
    %v1412 = vpop.f32.mrb[0].mxu0
    %v1413 = vadd.f32 0.0, %v1412
    %v1414 = vpop.f32.mrb[0].mxu0
    %v1415 = vpop.f32.mrb[0].mxu0
    %v1416 = vpop.f32.mrb[0].mxu0
    %1417 = vdwg.mxu0
    %v1418 = vadd.f32 %v411, %v1413
    %v1419 = vmul.f32 %v1418, %v309
    %v1420 = vtanh.pop %v1419
    %v1421 = vadd.f32 %v1420, 1.0
    %v1422 = vmul.f32 %v1421, 0.5
    %v1423 = vsel %vm308, %v1420, %v1422
    %v1424 = vmul.f32 %v1423, %v1294
    %1426 = vrot.lane.b32.xlu0 %v1423, 64
    %v1427 = vpop.permute.xlu0 %1426
    %v1429 = vmul.f32 %v1423, %v1427
    %1431 = vrot.lane.b32.xlu0 %v1429, 32
    %v1432 = vpop.permute.xlu0 %1431
    %v1434 = vadd.f32 %v1424, %v1432
    %v1435 = vtanh.pop %v1434
    %1437 = vrot.lane.b32.xlu0 %v1435, 64
    %v1438 = vpop.permute.xlu0 %1437
    %v1440 = vmul.f32 %v1423, %v1438
    %v1441 = vpack.c.bf16 %v1370, %v1370
    %1443 = vrot.lane.b32.xlu0 %v1441, 64
    %v1444 = vpop.permute.xlu0 %1443
    %v1446 = vsel %vm226, %v1374, %v1444
    %v1447 = vsel %vm606, %v1446, 0
    %1449 = vmatprep.subr.bf16.mxu0 0
    %1450 = vmatpush1.bf16.msra.mxu0 %v598
    %1451 = vmatprep.subr.bf16.mxu0 0
    %1452 = vmatpush1.bf16.msra.mxu0 %v599
    %1453 = vmatprep.subr.bf16.mxu0 0
    %1454 = vmatpush1.bf16.msra.mxu0 %v600
    %1455 = vmatprep.subr.bf16.mxu0 0
    %1456 = vmatpush1.bf16.msra.mxu0 %v601
    %1457 = vmatprep.subr.bf16.mxu0 0
    %1458 = vmatpush1.bf16.msra.mxu0 0
    %1459 = vmatprep.subr.bf16.mxu0 0
    %1460 = vmatpush1.bf16.msra.mxu0 0
    %1461 = vmatprep.subr.bf16.mxu0 0
    %1462 = vmatpush1.bf16.msra.mxu0 0
    %1463 = vmatprep.subr.bf16.mxu0 0
    %1464 = vmatpush1.bf16.msra.mxu0 0
    %1465 = vmatprep.subr.bf16.mxu0 0
    %1466 = vmatpush1.bf16.msra.mxu0 0
    %1467 = vmatprep.subr.bf16.mxu0 0
    %1468 = vmatpush1.bf16.msra.mxu0 0
    %1469 = vmatprep.subr.bf16.mxu0 0
    %1470 = vmatpush1.bf16.msra.mxu0 0
    %1471 = vmatprep.subr.bf16.mxu0 0
    %1472 = vmatpush1.bf16.msra.mxu0 0
    %1473 = vmatprep.subr.bf16.mxu0 0
    %1474 = vmatpush1.bf16.msra.mxu0 0
    %1475 = vmatprep.subr.bf16.mxu0 0
    %1476 = vmatpush1.bf16.msra.mxu0 0
    %1477 = vmatprep.subr.bf16.mxu0 0
    %1478 = vmatpush1.bf16.msra.mxu0 0
    %1479 = vmatprep.subr.bf16.mxu0 0
    %1480 = vmatpush1.bf16.msra.mxu0 0
    %1481 = vmatprep.mubr.bf16.mxu0 0
    %1482 = vmatmul.mubr.bf16.gmra.mrb[0].mxu0 %v1447
    %v1483 = vpop.f32.mrb[0].mxu0
    %v1484 = vadd.f32 %v580, %v1483
    %v1485 = vpop.f32.mrb[0].mxu0
    %v1486 = vpop.f32.mrb[0].mxu0
    %v1487 = vpop.f32.mrb[0].mxu0
    %1488 = vdwg.mxu0
    %v1489 = vmul.f32 %v1484, %v309
    %v1490 = vtanh.pop %v1489
    %v1491 = vadd.f32 %v1490, 1.0
    %v1492 = vmul.f32 %v1491, 0.5
    %v1493 = vsel %vm308, %v1490, %v1492
    %v1494 = vmul.f32 %v1493, %v1364
    %1496 = vrot.lane.b32.xlu0 %v1493, 64
    %v1497 = vpop.permute.xlu0 %1496
    %v1499 = vmul.f32 %v1493, %v1497
    %1501 = vrot.lane.b32.xlu0 %v1499, 32
    %v1502 = vpop.permute.xlu0 %1501
    %v1504 = vadd.f32 %v1494, %v1502
    %v1505 = vtanh.pop %v1504
    %1507 = vrot.lane.b32.xlu0 %v1505, 64
    %v1508 = vpop.permute.xlu0 %1507
    %v1510 = vmul.f32 %v1493, %v1508
    %v1511 = vpack.c.bf16 %v1440, %v1440
    %v1512 = vpack.c.bf16 %v1510, %v1510
    %1514 = vrot.lane.b32.xlu0 %v1511, 32
    %v1515 = vpop.permute.xlu0 %1514
    %1517 = vrot.lane.b32.xlu0 %v1512, 64
    %v1518 = vpop.permute.xlu0 %1517
    %v1521 = vsel %vm226, %v1515, %v1518
    %v1522 = vsel %vm606, %v1521, 0
    %1524 = vmatprep.subr.bf16.mxu0 0
    %1525 = vmatpush1.bf16.msra.mxu0 %v598
    %1526 = vmatprep.subr.bf16.mxu0 0
    %1527 = vmatpush1.bf16.msra.mxu0 %v599
    %1528 = vmatprep.subr.bf16.mxu0 0
    %1529 = vmatpush1.bf16.msra.mxu0 %v600
    %1530 = vmatprep.subr.bf16.mxu0 0
    %1531 = vmatpush1.bf16.msra.mxu0 %v601
    %1532 = vmatprep.subr.bf16.mxu0 0
    %1533 = vmatpush1.bf16.msra.mxu0 0
    %1534 = vmatprep.subr.bf16.mxu0 0
    %1535 = vmatpush1.bf16.msra.mxu0 0
    %1536 = vmatprep.subr.bf16.mxu0 0
    %1537 = vmatpush1.bf16.msra.mxu0 0
    %1538 = vmatprep.subr.bf16.mxu0 0
    %1539 = vmatpush1.bf16.msra.mxu0 0
    %1540 = vmatprep.subr.bf16.mxu0 0
    %1541 = vmatpush1.bf16.msra.mxu0 0
    %1542 = vmatprep.subr.bf16.mxu0 0
    %1543 = vmatpush1.bf16.msra.mxu0 0
    %1544 = vmatprep.subr.bf16.mxu0 0
    %1545 = vmatpush1.bf16.msra.mxu0 0
    %1546 = vmatprep.subr.bf16.mxu0 0
    %1547 = vmatpush1.bf16.msra.mxu0 0
    %1548 = vmatprep.subr.bf16.mxu0 0
    %1549 = vmatpush1.bf16.msra.mxu0 0
    %1550 = vmatprep.subr.bf16.mxu0 0
    %1551 = vmatpush1.bf16.msra.mxu0 0
    %1552 = vmatprep.subr.bf16.mxu0 0
    %1553 = vmatpush1.bf16.msra.mxu0 0
    %1554 = vmatprep.subr.bf16.mxu0 0
    %1555 = vmatpush1.bf16.msra.mxu0 0
    %1556 = vmatprep.mubr.bf16.mxu0 0
    %1557 = vmatmul.mubr.bf16.gmra.mrb[0].mxu0 %v1522
    %v1558 = vpop.f32.mrb[0].mxu0
    %v1559 = vadd.f32 %v580, %v1558
    %v1560 = vpop.f32.mrb[0].mxu0
    %v1561 = vpop.f32.mrb[0].mxu0
    %v1562 = vpop.f32.mrb[0].mxu0
    %1563 = vdwg.mxu0
    %v1564 = vmul.f32 %v1559, %v309
    %v1565 = vtanh.pop %v1564
    %v1566 = vadd.f32 %v1565, 1.0
    %v1567 = vmul.f32 %v1566, 0.5
    %v1568 = vsel %vm308, %v1565, %v1567
    %v1569 = vmul.f32 %v1568, %v1504
    %1571 = vrot.lane.b32.xlu0 %v1568, 64
    %v1572 = vpop.permute.xlu0 %1571
    %v1574 = vmul.f32 %v1568, %v1572
    %1576 = vrot.lane.b32.xlu0 %v1574, 32
    %v1577 = vpop.permute.xlu0 %1576
    %v1579 = vadd.f32 %v1569, %v1577
    %v1580 = vtanh.pop %v1579
    %1582 = vrot.lane.b32.xlu0 %v1580, 64
    %v1583 = vpop.permute.xlu0 %1582
    %v1585 = vmul.f32 %v1568, %v1583
    %v1586 = vpack.c.bf16 %v810, %v670
    %v1587 = vpack.c.bf16 %v1090, %v950
    %v1588 = vpack.c.bf16 %v1370, %v1230
    %v1589 = vpack.c.bf16 %v1585, %v1510
    %v1590 = vld [vmem:[%s10] sm:$0xf]
    %v1591 = vld [vmem:[%s10 + $0x4] sm:$0xf]
    %v1592 = vld [vmem:[%s10 + $0x8] sm:$0xf]
    %v1593 = vld [vmem:[%s10 + $0xc] sm:$0xf]
    %v1594 = vld [vmem:[%s11] sm:$0x1]
    %v1596 = vlaneseq
    %v1597 = vshrl.u32 %v1596, 7
    %v1598 = vsub.s32 0, %v1597
    %v1599 = vrot.slane %v1594, %v1598
    %1605 = vrot.lane.b32.xlu0 %v1586, 32
    %v1606 = vpop.permute.xlu0 %1605
    %1607 = vrot.lane.b32.xlu0 %v1587, 32
    %v1608 = vpop.permute.xlu0 %1607
    %1609 = vrot.lane.b32.xlu0 %v1588, 32
    %v1610 = vpop.permute.xlu0 %1609
    %1611 = vrot.lane.b32.xlu0 %v1589, 32
    %v1612 = vpop.permute.xlu0 %1611
    %v1617 = vunpack.c.l.b16 %v1590
    %v1618 = vunpack.c.l.b16 %v1591
    %v1619 = vunpack.c.l.b16 %v1592
    %v1620 = vunpack.c.l.b16 %v1593
    %v1621 = vpack.c.b16 %v1618, %v1617
    %v1622 = vpack.c.b16 %v1620, %v1619
    %v1626 = vsel %vm226, %v1606, 0
    %v1629 = vsel %vm226, %v1608, 0
    %v1632 = vsel %vm226, %v1610, 0
    %v1635 = vsel %vm226, %v1612, 0
    %1637 = vmatprep.subr.bf16.mxu0 0
    %1638 = vmatpush1.bf16.msra.mxu0 %v1621
    %1639 = vmatprep.subr.bf16.mxu0 0
    %1640 = vmatpush1.bf16.msra.mxu0 %v1622
    %1641 = vmatprep.subr.bf16.mxu0 0
    %1642 = vmatpush1.bf16.msra.mxu0 0
    %1643 = vmatprep.subr.bf16.mxu0 0
    %1644 = vmatpush1.bf16.msra.mxu0 0
    %1645 = vmatprep.subr.bf16.mxu0 0
    %1646 = vmatpush1.bf16.msra.mxu0 0
    %1647 = vmatprep.subr.bf16.mxu0 0
    %1648 = vmatpush1.bf16.msra.mxu0 0
    %1649 = vmatprep.subr.bf16.mxu0 0
    %1650 = vmatpush1.bf16.msra.mxu0 0
    %1651 = vmatprep.subr.bf16.mxu0 0
    %1652 = vmatpush1.bf16.msra.mxu0 0
    %1653 = vmatprep.subr.bf16.mxu0 0
    %1654 = vmatpush1.bf16.msra.mxu0 0
    %1655 = vmatprep.subr.bf16.mxu0 0
    %1656 = vmatpush1.bf16.msra.mxu0 0
    %1657 = vmatprep.subr.bf16.mxu0 0
    %1658 = vmatpush1.bf16.msra.mxu0 0
    %1659 = vmatprep.subr.bf16.mxu0 0
    %1660 = vmatpush1.bf16.msra.mxu0 0
    %1661 = vmatprep.subr.bf16.mxu0 0
    %1662 = vmatpush1.bf16.msra.mxu0 0
    %1663 = vmatprep.subr.bf16.mxu0 0
    %1664 = vmatpush1.bf16.msra.mxu0 0
    %1665 = vmatprep.subr.bf16.mxu0 0
    %1666 = vmatpush1.bf16.msra.mxu0 0
    %1667 = vmatprep.subr.bf16.mxu0 0
    %1668 = vmatpush1.bf16.msra.mxu0 0
    %1669 = vmatprep.mubr.bf16.mxu0 0
    %1670 = vmatmul.mubr.bf16.gmra.mrb[0].mxu0 %v1626
    %v1671 = vpop.f32.mrb[0].mxu0
    %v1672 = vadd.f32 %v1599, %v1671
    %v1673 = vpop.f32.mrb[0].mxu0
    %v1674 = vpop.f32.mrb[0].mxu0
    %v1675 = vadd.f32 %v1599, %v1674
    %v1676 = vpop.f32.mrb[0].mxu0
    %1677 = vmatprep.mubr.bf16.mxu0 0
    %1678 = vmatmul.mubr.bf16.gmra.mrb[0].mxu0 %v1629
    %v1679 = vpop.f32.mrb[0].mxu0
    %v1680 = vadd.f32 %v1599, %v1679
    %v1681 = vpop.f32.mrb[0].mxu0
    %v1682 = vpop.f32.mrb[0].mxu0
    %v1683 = vadd.f32 %v1599, %v1682
    %v1684 = vpop.f32.mrb[0].mxu0
    %1685 = vmatprep.mubr.bf16.mxu0 0
    %1686 = vmatmul.mubr.bf16.gmra.mrb[0].mxu0 %v1632
    %v1687 = vpop.f32.mrb[0].mxu0
    %v1688 = vadd.f32 %v1599, %v1687
    %v1689 = vpop.f32.mrb[0].mxu0
    %v1690 = vpop.f32.mrb[0].mxu0
    %v1691 = vadd.f32 %v1599, %v1690
    %v1692 = vpop.f32.mrb[0].mxu0
    %1693 = vmatprep.mubr.bf16.mxu0 0
    %1694 = vmatmul.mubr.bf16.gmra.mrb[0].mxu0 %v1635
    %v1695 = vpop.f32.mrb[0].mxu0
    %v1696 = vadd.f32 %v1599, %v1695
    %v1697 = vpop.f32.mrb[0].mxu0
    %v1698 = vpop.f32.mrb[0].mxu0
    %v1699 = vadd.f32 %v1599, %v1698
    %v1700 = vpop.f32.mrb[0].mxu0
    %1701 = vdwg.mxu0
    %v1702 = vmax.f32 %v1672, 0.0
    %v1703 = vmax.f32 %v1675, 0.0
    %v1704 = vmax.f32 %v1680, 0.0
    %v1705 = vmax.f32 %v1683, 0.0
    %v1706 = vmax.f32 %v1688, 0.0
    %v1707 = vmax.f32 %v1691, 0.0
    %v1708 = vmax.f32 %v1696, 0.0
    %v1709 = vmax.f32 %v1699, 0.0
    %v1710 = vpack.c.bf16 %v1703, %v1702
    %v1711 = vpack.c.bf16 %v1705, %v1704
    %v1712 = vpack.c.bf16 %v1707, %v1706
    %v1713 = vpack.c.bf16 %v1709, %v1708
    %v1714 = vld [vmem:[%s12] sm:$0xf]
    %v1715 = vld [vmem:[%s12 + $0x4] sm:$0xf]
    %v1716 = vld [vmem:[%s12 + $0x8] sm:$0xf]
    %v1717 = vld [vmem:[%s12 + $0xc] sm:$0xf]
    %v1718 = vld [vmem:[%s13] sm:$0x1]
    %v1720 = vlaneseq
    %v1721 = vshrl.u32 %v1720, 7
    %v1722 = vsub.s32 0, %v1721
    %v1723 = vrot.slane %v1718, %v1722
    %v1729 = vunpack.c.l.b16 %v1714
    %v1730 = vunpack.c.l.b16 %v1715
    %v1731 = vunpack.c.l.b16 %v1716
    %v1732 = vunpack.c.l.b16 %v1717
    %v1733 = vpack.c.b16 %v1730, %v1729
    %v1734 = vpack.c.b16 %v1732, %v1731
    %v1738 = vsel %vm226, %v1710, 0
    %v1741 = vsel %vm226, %v1711, 0
    %v1744 = vsel %vm226, %v1712, 0
    %v1747 = vsel %vm226, %v1713, 0
    %1749 = vmatprep.subr.bf16.mxu0 0
    %1750 = vmatpush1.bf16.msra.mxu0 %v1733
    %1751 = vmatprep.subr.bf16.mxu0 0
    %1752 = vmatpush1.bf16.msra.mxu0 %v1734
    %1753 = vmatprep.subr.bf16.mxu0 0
    %1754 = vmatpush1.bf16.msra.mxu0 0
    %1755 = vmatprep.subr.bf16.mxu0 0
    %1756 = vmatpush1.bf16.msra.mxu0 0
    %1757 = vmatprep.subr.bf16.mxu0 0
    %1758 = vmatpush1.bf16.msra.mxu0 0
    %1759 = vmatprep.subr.bf16.mxu0 0
    %1760 = vmatpush1.bf16.msra.mxu0 0
    %1761 = vmatprep.subr.bf16.mxu0 0
    %1762 = vmatpush1.bf16.msra.mxu0 0
    %1763 = vmatprep.subr.bf16.mxu0 0
    %1764 = vmatpush1.bf16.msra.mxu0 0
    %1765 = vmatprep.subr.bf16.mxu0 0
    %1766 = vmatpush1.bf16.msra.mxu0 0
    %1767 = vmatprep.subr.bf16.mxu0 0
    %1768 = vmatpush1.bf16.msra.mxu0 0
    %1769 = vmatprep.subr.bf16.mxu0 0
    %1770 = vmatpush1.bf16.msra.mxu0 0
    %1771 = vmatprep.subr.bf16.mxu0 0
    %1772 = vmatpush1.bf16.msra.mxu0 0
    %1773 = vmatprep.subr.bf16.mxu0 0
    %1774 = vmatpush1.bf16.msra.mxu0 0
    %1775 = vmatprep.subr.bf16.mxu0 0
    %1776 = vmatpush1.bf16.msra.mxu0 0
    %1777 = vmatprep.subr.bf16.mxu0 0
    %1778 = vmatpush1.bf16.msra.mxu0 0
    %1779 = vmatprep.subr.bf16.mxu0 0
    %1780 = vmatpush1.bf16.msra.mxu0 0
    %1781 = vmatprep.mubr.bf16.mxu0 0
    %1782 = vmatmul.mubr.bf16.gmra.mrb[0].mxu0 %v1738
    %v1783 = vpop.f32.mrb[0].mxu0
    %v1784 = vadd.f32 %v1723, %v1783
    %v1785 = vpop.f32.mrb[0].mxu0
    %v1786 = vpop.f32.mrb[0].mxu0
    %v1787 = vadd.f32 %v1723, %v1786
    %v1788 = vpop.f32.mrb[0].mxu0
    %1789 = vmatprep.mubr.bf16.mxu0 0
    %1790 = vmatmul.mubr.bf16.gmra.mrb[0].mxu0 %v1741
    %v1791 = vpop.f32.mrb[0].mxu0
    %v1792 = vadd.f32 %v1723, %v1791
    %v1793 = vpop.f32.mrb[0].mxu0
    %v1794 = vpop.f32.mrb[0].mxu0
    %v1795 = vadd.f32 %v1723, %v1794
    %v1796 = vpop.f32.mrb[0].mxu0
    %1797 = vmatprep.mubr.bf16.mxu0 0
    %1798 = vmatmul.mubr.bf16.gmra.mrb[0].mxu0 %v1744
    %v1799 = vpop.f32.mrb[0].mxu0
    %v1800 = vadd.f32 %v1723, %v1799
    %v1801 = vpop.f32.mrb[0].mxu0
    %v1802 = vpop.f32.mrb[0].mxu0
    %v1803 = vadd.f32 %v1723, %v1802
    %v1804 = vpop.f32.mrb[0].mxu0
    %1805 = vmatprep.mubr.bf16.mxu0 0
    %1806 = vmatmul.mubr.bf16.gmra.mrb[0].mxu0 %v1747
    %v1807 = vpop.f32.mrb[0].mxu0
    %v1808 = vadd.f32 %v1723, %v1807
    %v1809 = vpop.f32.mrb[0].mxu0
    %v1810 = vpop.f32.mrb[0].mxu0
    %v1811 = vadd.f32 %v1723, %v1810
    %v1812 = vpop.f32.mrb[0].mxu0
    %1813 = vdwg.mxu0
    %1814 = vst [vmem:[#allocation8] sm:$0xff] %v1784
    %1815 = vst [vmem:[#allocation8 + $0x8] sm:$0xff] %v1787
    %1816 = vst [vmem:[#allocation8 + $0x10] sm:$0xff] %v1792
    %1817 = vst [vmem:[#allocation8 + $0x18] sm:$0xff] %v1795
    %1818 = vst [vmem:[#allocation8 + $0x20] sm:$0xff] %v1800
    %1819 = vst [vmem:[#allocation8 + $0x28] sm:$0xff] %v1803
    %1820 = vst [vmem:[#allocation8 + $0x30] sm:$0xff] %v1808
    %1821 = vst [vmem:[#allocation8 + $0x38] sm:$0xff] %v1811
    // Predicated region
    $region70: #{tpu_custom_call.1} parent=1 // pred_check
      _
    $region71: #{tpu_custom_call.1} parent=1 // pred_check_branch
      %1823 = sbr.rel (0) target = $region73
    $region72: #{tpu_custom_call.1} parent=1 // pred_region
      %s1825 = ssub.s32 1024, 1024
      %1826 = vsyncadd [#allocation4], %s1825
      %s1827 = sshll.u32 [#allocation8], 4
      %s1828 = int_to_ptr.vmem [resolvable:$true] %s1827
      %1833 = dma.vmem_to_hbm [thread:$0]  %s1828, 1024, %s14, [#allocation4], 128, 128, 8
    $region73: #{tpu_custom_call.1} parent=1 // pred_fallthru
      _
    // Predicated region
    $region74: #{tpu_custom_call.1} parent=1 // pred_check
      _
    $region75: #{tpu_custom_call.1} parent=1 // pred_check_branch
      %1835 = sbr.rel (0) target = $region77
    $region76: #{tpu_custom_call.1} parent=1 // pred_region
      %1836 = dma.done [#allocation4], 1024
    $region77: #{tpu_custom_call.1} parent=1 // pred_fallthru
      _
    %1837 = vsyncpa [#allocation3], 1
    %1838 = vsyncpa [#allocation6], 1
    %1839 = vsyncpa [#allocation4], 1

</llo_original>
